<compile_context>
chip_gen: v5e
topology: v5e:2x2
jax: 0.10.0
libtpu: 0.0.40
codegen_flags: <defaults>
</compile_context>

<pallas_src>
import math
import functools

import jax
import jax.numpy as jnp
from jax import lax
from jax.experimental import pallas as pl
from jax.experimental.pallas import tpu as pltpu


_GELU_K = math.sqrt(2.0 / math.pi)
_NEG_BIG = -1e30  # finite mask value (avoids (-inf)-(-inf) NaNs)


# ----------------------------- in-kernel helpers ---------------------------

def _layernorm(x, g, b, eps=1e-5):
    mu = jnp.mean(x, axis=-1, keepdims=True)
    var = jnp.mean((x - mu) ** 2, axis=-1, keepdims=True)
    return (x - mu) * lax.rsqrt(var + eps) * g + b


def _gelu(x):
    # exact tanh-approx GELU from the reference `gelu`
    return 0.5 * x * (1.0 + jnp.tanh(_GELU_K * (x + 0.044715 * x * x * x)))


# ----------------------------- Pallas kernels ------------------------------

def _stack_kernel(n_heads,
                  x_ref, mask_ref,
                  ln1g_ref, ln1b_ref, wqkv_ref, projw_ref, projb_ref,
                  ln2g_ref, ln2b_ref, fc1w_ref, fc1b_ref, fc2w_ref, fc2b_ref,
                  o_ref, h_sc):
    """One transformer layer for a group of batch rows.

    Grid = (batch_group, layer). The activation carry lives in h_sc (VMEM) and
    is initialized from x_ref at layer 0; the output is written only at the
    last layer (pl.when) so the HBM writeback happens once per batch group.
    """
    l = pl.program_id(1)
    n_layers = pl.num_programs(1)
    M, C = x_ref.shape
    H = n_heads
    Dh = C // H
    scale = Dh ** -0.5
    bf16 = jnp.bfloat16

    @pl.when(l == 0)
    def _():
        h_sc[...] = x_ref[...]

    x = h_sc[...]                                       # (M, C) f32

    # ---- self-attention: LN1 -> batched per-head QKV -> attn -> folded proj ----
    ln1 = _layernorm(x, ln1g_ref[0], ln1b_ref[0])
    lhs = jnp.broadcast_to(ln1.astype(bf16)[None], (3 * H, M, C))
    qkv = lax.dot_general(lhs, wqkv_ref[0],             # (3H, C, Dh) bf16
                          dimension_numbers=(((2,), (1,)), ((0,), (0,))),
                          preferred_element_type=jnp.float32)   # (3H, M, Dh)
    q = qkv[:H].astype(bf16)                            # (H, M, Dh)
    k = qkv[H:2 * H].astype(bf16)
    v = qkv[2 * H:].astype(bf16)

    s = lax.dot_general(q, k,                           # q @ k^T per head
                        dimension_numbers=(((2,), (2,)), ((0,), (0,))),
                        preferred_element_type=jnp.float32) * scale   # (H, M, M)
    s = s + mask_ref[...][None]                         # block-diag causal bias
    s = s - jnp.max(s, axis=-1, keepdims=True)
    p = jnp.exp(s)
    p = p / jnp.sum(p, axis=-1, keepdims=True)

    o = lax.dot_general(p.astype(bf16), v,              # attn @ v per head
                        dimension_numbers=(((2,), (1,)), ((0,), (0,))),
                        preferred_element_type=jnp.float32)     # (H, M, Dh)
    # output projection folded per head: sum_h (o_h @ W_proj[h*Dh:(h+1)*Dh, :])
    ph = lax.dot_general(o.astype(bf16), projw_ref[0],  # (H, Dh, C) bf16
                         dimension_numbers=(((2,), (1,)), ((0,), (0,))),
                         preferred_element_type=jnp.float32)    # (H, M, C)
    h1 = x + jnp.sum(ph, axis=0) + projb_ref[0]         # residual 1

    # ---- feed-forward: LN2 -> FC1 + GELU -> FC2 ----
    ln2 = _layernorm(h1, ln2g_ref[0], ln2b_ref[0])
    ff = jnp.dot(ln2.astype(bf16), fc1w_ref[0],
                 preferred_element_type=jnp.float32) + fc1b_ref[0]
    ff = _gelu(ff)
    ff = jnp.dot(ff.astype(bf16), fc2w_ref[0],
                 preferred_element_type=jnp.float32) + fc2b_ref[0]

    h_new = h1 + ff                                     # residual 2
    h_sc[...] = h_new

    @pl.when(l == n_layers - 1)
    def _():
        o_ref[...] = h_new


def _final_kernel(x_ref, g_ref, b_ref, w_ref, lb_ref, o_ref):
    """Fused final LayerNorm + lm_head (vocab padded & tiled, lane-dense)."""
    ln = _layernorm(x_ref[...], g_ref[...], b_ref[...])
    o_ref[...] = jnp.dot(ln.astype(jnp.bfloat16), w_ref[...],
                         preferred_element_type=jnp.float32) + lb_ref[...]


# ----------------------------- wrappers -------------------------------------

def _pick_bblk(B, T):
    """Batch elements per grid step: aim for >=16 matmul rows while keeping
    >=2 batch groups so v7x's two TensorCores both get work."""
    divisors = [d for d in range(1, B + 1) if B % d == 0]
    good = [d for d in divisors if d * T >= 16 and B // d >= 2]
    if good:
        return min(good)
    good = [d for d in divisors if d * T >= 16]
    if good:
        return min(good)
    return B


def transformer_stack(x2d, st, mask_bias, n_heads, rows, n_groups, n_layers):
    Mtot, C = x2d.shape
    H = n_heads
    Dh = C // H
    kern = functools.partial(_stack_kernel, n_heads)
    wmap3 = lambda bg, l: (l, 0, 0)
    wmap4 = lambda bg, l: (l, 0, 0, 0)
    return pl.pallas_call(
        kern,
        out_shape=jax.ShapeDtypeStruct((Mtot, C), jnp.float32),
        grid=(n_groups, n_layers),
        in_specs=[
            pl.BlockSpec((rows, C), lambda bg, l: (bg, 0)),        # x (rows resident per group)
            pl.BlockSpec((rows, rows), lambda bg, l: (0, 0)),      # additive causal mask
            pl.BlockSpec((1, 1, C), wmap3),                        # ln1_g
            pl.BlockSpec((1, 1, C), wmap3),                        # ln1_b
            pl.BlockSpec((1, 3 * H, C, Dh), wmap4),                # per-head QKV weights (bf16)
            pl.BlockSpec((1, H, Dh, C), wmap4),                    # per-head proj weights (bf16)
            pl.BlockSpec((1, 1, C), wmap3),                        # proj_b
            pl.BlockSpec((1, 1, C), wmap3),                        # ln2_g
            pl.BlockSpec((1, 1, C), wmap3),                        # ln2_b
            pl.BlockSpec((1, C, 4 * C), wmap3),                    # fc1_w (bf16)
            pl.BlockSpec((1, 1, 4 * C), wmap3),                    # fc1_b
            pl.BlockSpec((1, 4 * C, C), wmap3),                    # fc2_w (bf16)
            pl.BlockSpec((1, 1, C), wmap3),                        # fc2_b
        ],
        out_specs=pl.BlockSpec((rows, C), lambda bg, l: (bg, 0)),
        scratch_shapes=[pltpu.VMEM((rows, C), jnp.float32)],       # activation carry
        compiler_params=pltpu.CompilerParams(
            dimension_semantics=("parallel", "arbitrary"),
            vmem_limit_bytes=32 * 1024 * 1024),
    )(x2d, mask_bias,
      st["ln1_g"], st["ln1_b"], st["wqkv"], st["proj_w"], st["proj_b"],
      st["ln2_g"], st["ln2_b"], st["fc1_w"], st["fc1_b"], st["fc2_w"],
      st["fc2_b"])


def final_ln_head(x2d, g, b, w_pad, b_pad):
    Mtot, C = x2d.shape
    Vp = w_pad.shape[1]
    # Row blocking: a single big block, or two blocks (>=16 rows each) so both
    # v7x TensorCores participate.
    if Mtot % 2 == 0 and (Mtot // 2) >= 16 and (Mtot // 2) % 8 == 0:
        rows = Mtot // 2
    else:
        rows = Mtot
    # Vocab tiling (lane-dense, multiples of 128); keeps large-vocab lm_head
    # weights from having to be fully VMEM-resident.
    vt = min(Vp, 2048)
    while Vp % vt != 0:
        vt -= 128
    return pl.pallas_call(
        _final_kernel,
        out_shape=jax.ShapeDtypeStruct((Mtot, Vp), jnp.float32),
        grid=(Mtot // rows, Vp // vt),
        in_specs=[pl.BlockSpec((rows, C), lambda i, j: (i, 0)),
                  pl.BlockSpec((1, C), lambda i, j: (0, 0)),
                  pl.BlockSpec((1, C), lambda i, j: (0, 0)),
                  pl.BlockSpec((C, vt), lambda i, j: (0, j)),
                  pl.BlockSpec((1, vt), lambda i, j: (0, j))],
        out_specs=pl.BlockSpec((rows, vt), lambda i, j: (i, j)),
        compiler_params=pltpu.CompilerParams(
            dimension_semantics=("parallel", "parallel"),
            vmem_limit_bytes=32 * 1024 * 1024),
    )(x2d, g, b, w_pad, b_pad)


# ----------------------------- model ---------------------------------------

class Config:
    n_embd = 32
    n_heads = 4
    n_layers = 2
    block_size = 8
    dropout = 0.0


def make_positional_encoding(block_size, n_embd):
    position = jnp.arange(block_size, dtype=jnp.float32)[:, None]
    div_term = jnp.exp(jnp.arange(0, n_embd, 2, dtype=jnp.float32)
                       * (-math.log(10000.0) / n_embd))
    pe = jnp.zeros((block_size, n_embd), dtype=jnp.float32)
    pe = pe.at[:, 0::2].set(jnp.sin(position * div_term))
    pe = pe.at[:, 1::2].set(jnp.cos(position * div_term))
    return pe


def init_params(key, vocab_size, cfg):
    C = cfg.n_embd

    def nrm(k, shape, scale=0.02):
        return scale * jax.random.normal(k, shape, dtype=jnp.float32)

    keys = iter(jax.random.split(key, 2 + cfg.n_layers * 6))
    params = {
        "embedding": nrm(next(keys), (vocab_size, C)),
        "pe": make_positional_encoding(cfg.block_size, C),
        "ln_g": jnp.ones((C,), jnp.float32),
        "ln_b": jnp.zeros((C,), jnp.float32),
        "lm_w": nrm(next(keys), (C, vocab_size)),
        "lm_b": jnp.zeros((vocab_size,), jnp.float32),
        "blocks": [],
    }
    for _ in range(cfg.n_layers):
        blk = {
            # per-head q/k/v Linear(C, Dh, bias=False) weights, concatenated
            # along the output dim (== torch.cat over heads)
            "wq": nrm(next(keys), (C, C)),
            "wk": nrm(next(keys), (C, C)),
            "wv": nrm(next(keys), (C, C)),
            "proj_w": nrm(next(keys), (C, C)),
            "proj_b": jnp.zeros((C,), jnp.float32),
            "fc1_w": nrm(next(keys), (C, 4 * C)),
            "fc1_b": jnp.zeros((4 * C,), jnp.float32),
            "fc2_w": nrm(next(keys), (4 * C, C)),
            "fc2_b": jnp.zeros((C,), jnp.float32),
            "ln1_g": jnp.ones((C,), jnp.float32),
            "ln1_b": jnp.zeros((C,), jnp.float32),
            "ln2_g": jnp.ones((C,), jnp.float32),
            "ln2_b": jnp.zeros((C,), jnp.float32),
        }
        params["blocks"].append(blk)
    return params


def prepare_params(params, cfg, vocab_size):
    """One-time packing: per-head QKV/proj weight layouts, layer-stacked
    weights (leading n_layers axis), bf16 matmul weights, vocab padded to a
    multiple of 128, 1-D params reshaped to (1, N)."""
    C = cfg.n_embd
    H = cfg.n_heads
    Dh = C // H
    Vp = ((vocab_size + 127) // 128) * 128

    lm_w = jnp.zeros((C, Vp), jnp.float32).at[:, :vocab_size].set(params["lm_w"])
    lm_b = jnp.zeros((1, Vp), jnp.float32).at[0, :vocab_size].set(params["lm_b"])

    def per_head(w):  # (C, C) -> (H, C, Dh); columns were grouped per head
        return w.reshape(C, H, Dh).transpose(1, 0, 2)

    cols = {k: [] for k in ("wqkv", "proj_w", "proj_b", "ln1_g", "ln1_b",
                            "ln2_g", "ln2_b", "fc1_w", "fc1_b", "fc2_w",
                            "fc2_b")}
    for blk in params["blocks"]:
        cols["wqkv"].append(jnp.concatenate(
            [per_head(blk["wq"]), per_head(blk["wk"]), per_head(blk["wv"])],
            axis=0).astype(jnp.bfloat16))                       # (3H, C, Dh)
        cols["proj_w"].append(blk["proj_w"].reshape(H, Dh, C).astype(jnp.bfloat16))
        cols["proj_b"].append(blk["proj_b"].reshape(1, C))
        cols["ln1_g"].append(blk["ln1_g"].reshape(1, C))
        cols["ln1_b"].append(blk["ln1_b"].reshape(1, C))
        cols["ln2_g"].append(blk["ln2_g"].reshape(1, C))
        cols["ln2_b"].append(blk["ln2_b"].reshape(1, C))
        cols["fc1_w"].append(blk["fc1_w"].astype(jnp.bfloat16))
        cols["fc1_b"].append(blk["fc1_b"].reshape(1, 4 * C))
        cols["fc2_w"].append(blk["fc2_w"].astype(jnp.bfloat16))
        cols["fc2_b"].append(blk["fc2_b"].reshape(1, C))

    stack = {k: jnp.stack(v, axis=0) for k, v in cols.items()}
    return {
        "embedding": params["embedding"],
        "pe": params["pe"],
        "ln_g": params["ln_g"].reshape(1, C),
        "ln_b": params["ln_b"].reshape(1, C),
        "lm_w": lm_w.astype(jnp.bfloat16),
        "lm_b": lm_b,
        "stack": stack,
    }


def gpt_forward(packed, tokens, cfg, vocab_size):
    B, T = tokens.shape
    C = cfg.n_embd
    # embedding gather + positional add (plain JAX glue; the gather has no
    # clean rectangular BlockSpec form at this size)
    h = jnp.take(packed["embedding"], tokens, axis=0) + packed["pe"][:T][None, :, :]
    x2d = h.reshape(B * T, C)

    bblk = _pick_bblk(B, T)
    rows = bblk * T
    n_groups = B // bblk

    # block-diagonal causal additive mask for `bblk` batch elements per step
    idx = jnp.arange(rows)
    same_batch = (idx[:, None] // T) == (idx[None, :] // T)
    causal = idx[None, :] <= idx[:, None]
    mask_bias = jnp.where(same_batch & causal, 0.0, _NEG_BIG).astype(jnp.float32)

    x2d = transformer_stack(x2d, packed["stack"], mask_bias, cfg.n_heads,
                            rows, n_groups, cfg.n_layers)

    logits_pad = final_ln_head(x2d, packed["ln_g"], packed["ln_b"],
                               packed["lm_w"], packed["lm_b"])
    logits = logits_pad[:, :vocab_size].reshape(B, T, vocab_size)
    # TODO(synk): cross_entropy loss (targets path) and `generate` multinomial
    #             sampling are host-side / glue concerns; not Pallas kernels.
    return logits, None


# ----------------------------- main -----------------------------------------

if __name__ == "__main__":
    cfg = Config()
    vocab_size = 50
    B, T = 4, cfg.block_size   # 4 x 8 tokens -> 16-row matmul tiles, 2 batch groups

    key = jax.random.PRNGKey(0)
    pkey, tkey = jax.random.split(key)
    raw_params = init_params(pkey, vocab_size, cfg)
    packed = prepare_params(raw_params, cfg, vocab_size)
    tokens = jax.random.randint(tkey, (B, T), 0, vocab_size, dtype=jnp.int32)

    fwd = jax.jit(lambda p, t: gpt_forward(p, t, cfg, vocab_size))
    logits, loss = fwd(packed, tokens)
    logits = jax.block_until_ready(logits)

    assert logits.shape == (B, T, vocab_size)
    assert bool(jnp.all(jnp.isfinite(logits)))
    print("KERNEL_OK")
</pallas_src>

<mosaic_0001>
module attributes {stable_mosaic.version = 11 : i64} {
  func.func @_final_kernel(%arg0: i32, %arg1: i32, %arg2: memref<16x32xf32, #tpu.memory_space<vmem>>, %arg3: memref<1x32xf32, #tpu.memory_space<vmem>>, %arg4: memref<1x32xf32, #tpu.memory_space<vmem>>, %arg5: memref<32x128xbf16, #tpu.memory_space<vmem>>, %arg6: memref<1x128xf32, #tpu.memory_space<vmem>>, %arg7: memref<16x128xf32, #tpu.memory_space<vmem>>) attributes {dimension_semantics = [#tpu.dimension_semantics<parallel>, #tpu.dimension_semantics<parallel>], iteration_bounds = array<i64: 2, 1>, scalar_prefetch = 0 : i64, scratch_operands = 0 : i64, tpu.core_type = #tpu.core_type<tc>, window_params = [{transform_indices = @transform_0, window_bounds = array<i64: 16, 32>}, {pipeline_mode = #tpu.pipeline_mode<synchronous>, transform_indices = @transform_1, window_bounds = array<i64: 1, 32>}, {pipeline_mode = #tpu.pipeline_mode<synchronous>, transform_indices = @transform_2, window_bounds = array<i64: 1, 32>}, {transform_indices = @transform_3, window_bounds = array<i64: 32, 128>}, {transform_indices = @transform_4, window_bounds = array<i64: 1, 128>}, {transform_indices = @transform_5, window_bounds = array<i64: 16, 128>}]} {
    %c0 = arith.constant 0 : index
    %c0_0 = arith.constant 0 : index
    %0 = vector.load %arg2[%c0, %c0_0] : memref<16x32xf32, #tpu.memory_space<vmem>>, vector<16x32xf32>
    %c0_1 = arith.constant 0 : index
    %c0_2 = arith.constant 0 : index
    %1 = vector.load %arg3[%c0_1, %c0_2] : memref<1x32xf32, #tpu.memory_space<vmem>>, vector<1x32xf32>
    %c0_3 = arith.constant 0 : index
    %c0_4 = arith.constant 0 : index
    %2 = vector.load %arg4[%c0_3, %c0_4] : memref<1x32xf32, #tpu.memory_space<vmem>>, vector<1x32xf32>
    %cst = arith.constant dense<0.000000e+00> : vector<16xf32>
    %3 = vector.multi_reduction <add>, %0, %cst [1] : vector<16x32xf32> to vector<16xf32>
    %4 = vector.shape_cast %3 : vector<16xf32> to vector<16x1xf32>
    %cst_5 = arith.constant 3.200000e+01 : f32
    %5 = vector.broadcast %cst_5 : f32 to vector<16x1xf32>
    %6 = arith.divf %4, %5 : vector<16x1xf32>
    %7 = vector.broadcast %6 : vector<16x1xf32> to vector<16x32xf32>
    %8 = arith.subf %0, %7 : vector<16x32xf32>
    %9 = arith.mulf %8, %8 : vector<16x32xf32>
    %cst_6 = arith.constant dense<0.000000e+00> : vector<16xf32>
    %10 = vector.multi_reduction <add>, %9, %cst_6 [1] : vector<16x32xf32> to vector<16xf32>
    %11 = vector.shape_cast %10 : vector<16xf32> to vector<16x1xf32>
    %cst_7 = arith.constant 3.200000e+01 : f32
    %12 = vector.broadcast %cst_7 : f32 to vector<16x1xf32>
    %13 = arith.divf %11, %12 : vector<16x1xf32>
    %14 = vector.broadcast %6 : vector<16x1xf32> to vector<16x32xf32>
    %15 = arith.subf %0, %14 : vector<16x32xf32>
    %cst_8 = arith.constant 9.99999974E-6 : f32
    %16 = vector.broadcast %cst_8 : f32 to vector<16x1xf32>
    %17 = arith.addf %13, %16 : vector<16x1xf32>
    %18 = math.rsqrt %17 : vector<16x1xf32>
    %19 = vector.broadcast %18 : vector<16x1xf32> to vector<16x32xf32>
    %20 = arith.mulf %15, %19 : vector<16x32xf32>
    %21 = vector.broadcast %1 : vector<1x32xf32> to vector<16x32xf32>
    %22 = arith.mulf %20, %21 : vector<16x32xf32>
    %23 = vector.broadcast %2 : vector<1x32xf32> to vector<16x32xf32>
    %24 = arith.addf %22, %23 : vector<16x32xf32>
    %25 = arith.truncf %24 : vector<16x32xf32> to vector<16x32xbf16>
    %c0_9 = arith.constant 0 : index
    %c0_10 = arith.constant 0 : index
    %26 = vector.load %arg5[%c0_9, %c0_10] : memref<32x128xbf16, #tpu.memory_space<vmem>>, vector<32x128xbf16>
    %cst_11 = arith.constant dense<0.000000e+00> : vector<16x128xf32>
    %27 = tpu.matmul %25, %26, %cst_11 {dimension_numbers = #tpu.dot_dimension_numbers<[1], [0], [0], [1], [0, 0, 1, 1], [], []>} : vector<16x32xbf16>, vector<32x128xbf16>, vector<16x128xf32> -> vector<16x128xf32>
    %c0_12 = arith.constant 0 : index
    %c0_13 = arith.constant 0 : index
    %28 = vector.load %arg6[%c0_12, %c0_13] : memref<1x128xf32, #tpu.memory_space<vmem>>, vector<1x128xf32>
    %29 = vector.broadcast %28 : vector<1x128xf32> to vector<16x128xf32>
    %30 = arith.addf %27, %29 : vector<16x128xf32>
    %c0_14 = arith.constant 0 : index
    %c0_15 = arith.constant 0 : index
    %31 = vector.load %arg7[%c0_14, %c0_15] : memref<16x128xf32, #tpu.memory_space<vmem>>, vector<16x128xf32>
    tpu.vector_store %arg7[%c0_14, %c0_15], %30 {strides = array<i32>} : memref<16x128xf32, #tpu.memory_space<vmem>>, vector<16x128xf32>,
    return
  }
  func.func @transform_0(%arg0: i32, %arg1: i32) -> (i32, i32) {
    %c0_i32 = arith.constant 0 : i32
    %c0_i32_0 = arith.constant 0 : i32
    return %arg0, %c0_i32 : i32, i32
  }
  func.func @transform_1(%arg0: i32, %arg1: i32) -> (i32, i32) {
    %c0_i32 = arith.constant 0 : i32
    %c0_i32_0 = arith.constant 0 : i32
    %c0_i32_1 = arith.constant 0 : i32
    return %c0_i32, %c0_i32_0 : i32, i32
  }
  func.func @transform_2(%arg0: i32, %arg1: i32) -> (i32, i32) {
    %c0_i32 = arith.constant 0 : i32
    %c0_i32_0 = arith.constant 0 : i32
    %c0_i32_1 = arith.constant 0 : i32
    return %c0_i32, %c0_i32_0 : i32, i32
  }
  func.func @transform_3(%arg0: i32, %arg1: i32) -> (i32, i32) {
    %c0_i32 = arith.constant 0 : i32
    %c0_i32_0 = arith.constant 0 : i32
    return %c0_i32, %arg1 : i32, i32
  }
  func.func @transform_4(%arg0: i32, %arg1: i32) -> (i32, i32) {
    %c0_i32 = arith.constant 0 : i32
    %c0_i32_0 = arith.constant 0 : i32
    return %c0_i32, %arg1 : i32, i32
  }
  func.func @transform_5(%arg0: i32, %arg1: i32) -> (i32, i32) {
    %c0_i32 = arith.constant 0 : i32
    return %arg0, %arg1 : i32, i32
  }
}

module attributes {stable_mosaic.version = 11 : i64} {
  func.func @_stack_kernel(%arg0: i32, %arg1: i32, %arg2: memref<16x32xf32, #tpu.memory_space<vmem>>, %arg3: memref<16x16xf32, #tpu.memory_space<vmem>>, %arg4: memref<1x1x32xf32, #tpu.memory_space<vmem>>, %arg5: memref<1x1x32xf32, #tpu.memory_space<vmem>>, %arg6: memref<1x12x32x8xbf16, #tpu.memory_space<vmem>>, %arg7: memref<1x4x8x32xbf16, #tpu.memory_space<vmem>>, %arg8: memref<1x1x32xf32, #tpu.memory_space<vmem>>, %arg9: memref<1x1x32xf32, #tpu.memory_space<vmem>>, %arg10: memref<1x1x32xf32, #tpu.memory_space<vmem>>, %arg11: memref<1x32x128xbf16, #tpu.memory_space<vmem>>, %arg12: memref<1x1x128xf32, #tpu.memory_space<vmem>>, %arg13: memref<1x128x32xbf16, #tpu.memory_space<vmem>>, %arg14: memref<1x1x32xf32, #tpu.memory_space<vmem>>, %arg15: memref<16x32xf32, #tpu.memory_space<vmem>>, %arg16: memref<16x32xf32, #tpu.memory_space<vmem>>) attributes {dimension_semantics = [#tpu.dimension_semantics<parallel>, #tpu.dimension_semantics<arbitrary>], iteration_bounds = array<i64: 2, 2>, scalar_prefetch = 0 : i64, scratch_operands = 1 : i64, tpu.core_type = #tpu.core_type<tc>, window_params = [{transform_indices = @transform_0, window_bounds = array<i64: 16, 32>}, {pipeline_mode = #tpu.pipeline_mode<synchronous>, transform_indices = @transform_1, window_bounds = array<i64: 16, 16>}, {transform_indices = @transform_2, window_bounds = array<i64: 1, 1, 32>}, {transform_indices = @transform_3, window_bounds = array<i64: 1, 1, 32>}, {transform_indices = @transform_4, window_bounds = array<i64: 1, 12, 32, 8>}, {transform_indices = @transform_5, window_bounds = array<i64: 1, 4, 8, 32>}, {transform_indices = @transform_6, window_bounds = array<i64: 1, 1, 32>}, {transform_indices = @transform_7, window_bounds = array<i64: 1, 1, 32>}, {transform_indices = @transform_8, window_bounds = array<i64: 1, 1, 32>}, {transform_indices = @transform_9, window_bounds = array<i64: 1, 32, 128>}, {transform_indices = @transform_10, window_bounds = array<i64: 1, 1, 128>}, {transform_indices = @transform_11, window_bounds = array<i64: 1, 128, 32>}, {transform_indices = @transform_12, window_bounds = array<i64: 1, 1, 32>}, {transform_indices = @transform_13, window_bounds = array<i64: 16, 32>}]} {
    %c0_i32 = arith.constant 0 : i32
    %0 = arith.cmpi eq, %arg1, %c0_i32 : i32
    %1 = arith.extui %0 : i1 to i32
    %c0_i32_0 = arith.constant 0 : i32
    %2 = arith.cmpi ne, %1, %c0_i32_0 : i32
    scf.if %2 {
      %c0_65 = arith.constant 0 : index
      %c0_66 = arith.constant 0 : index
      %131 = vector.load %arg2[%c0_65, %c0_66] : memref<16x32xf32, #tpu.memory_space<vmem>>, vector<16x32xf32>
      %c0_67 = arith.constant 0 : index
      %c0_68 = arith.constant 0 : index
      %132 = vector.load %arg16[%c0_67, %c0_68] : memref<16x32xf32, #tpu.memory_space<vmem>>, vector<16x32xf32>
      tpu.vector_store %arg16[%c0_67, %c0_68], %131 {strides = array<i32>} : memref<16x32xf32, #tpu.memory_space<vmem>>, vector<16x32xf32>,
    } else {
    }
    %c0 = arith.constant 0 : index
    %c0_1 = arith.constant 0 : index
    %3 = vector.load %arg16[%c0, %c0_1] : memref<16x32xf32, #tpu.memory_space<vmem>>, vector<16x32xf32>
    %c0_2 = arith.constant 0 : index
    %c0_3 = arith.constant 0 : index
    %c0_4 = arith.constant 0 : index
    %4 = vector.load %arg4[%c0_2, %c0_3, %c0_4] : memref<1x1x32xf32, #tpu.memory_space<vmem>>, vector<1x1x32xf32>
    %5 = vector.shape_cast %4 : vector<1x1x32xf32> to vector<1x32xf32>
    %c0_5 = arith.constant 0 : index
    %c0_6 = arith.constant 0 : index
    %c0_7 = arith.constant 0 : index
    %6 = vector.load %arg5[%c0_5, %c0_6, %c0_7] : memref<1x1x32xf32, #tpu.memory_space<vmem>>, vector<1x1x32xf32>
    %7 = vector.shape_cast %6 : vector<1x1x32xf32> to vector<1x32xf32>
    %cst = arith.constant dense<0.000000e+00> : vector<16xf32>
    %8 = vector.multi_reduction <add>, %3, %cst [1] : vector<16x32xf32> to vector<16xf32>
    %9 = vector.shape_cast %8 : vector<16xf32> to vector<16x1xf32>
    %cst_8 = arith.constant 3.200000e+01 : f32
    %10 = vector.broadcast %cst_8 : f32 to vector<16x1xf32>
    %11 = arith.divf %9, %10 : vector<16x1xf32>
    %12 = vector.broadcast %11 : vector<16x1xf32> to vector<16x32xf32>
    %13 = arith.subf %3, %12 : vector<16x32xf32>
    %14 = arith.mulf %13, %13 : vector<16x32xf32>
    %cst_9 = arith.constant dense<0.000000e+00> : vector<16xf32>
    %15 = vector.multi_reduction <add>, %14, %cst_9 [1] : vector<16x32xf32> to vector<16xf32>
    %16 = vector.shape_cast %15 : vector<16xf32> to vector<16x1xf32>
    %cst_10 = arith.constant 3.200000e+01 : f32
    %17 = vector.broadcast %cst_10 : f32 to vector<16x1xf32>
    %18 = arith.divf %16, %17 : vector<16x1xf32>
    %19 = vector.broadcast %11 : vector<16x1xf32> to vector<16x32xf32>
    %20 = arith.subf %3, %19 : vector<16x32xf32>
    %cst_11 = arith.constant 9.99999974E-6 : f32
    %21 = vector.broadcast %cst_11 : f32 to vector<16x1xf32>
    %22 = arith.addf %18, %21 : vector<16x1xf32>
    %23 = math.rsqrt %22 : vector<16x1xf32>
    %24 = vector.broadcast %23 : vector<16x1xf32> to vector<16x32xf32>
    %25 = arith.mulf %20, %24 : vector<16x32xf32>
    %26 = vector.broadcast %5 : vector<1x32xf32> to vector<16x32xf32>
    %27 = arith.mulf %25, %26 : vector<16x32xf32>
    %28 = vector.broadcast %7 : vector<1x32xf32> to vector<16x32xf32>
    %29 = arith.addf %27, %28 : vector<16x32xf32>
    %30 = arith.truncf %29 : vector<16x32xf32> to vector<16x32xbf16>
    %31 = vector.shape_cast %30 : vector<16x32xbf16> to vector<1x16x32xbf16>
    %32 = vector.shape_cast %31 : vector<1x16x32xbf16> to vector<1x16x32xbf16>
    %33 = vector.broadcast %32 : vector<1x16x32xbf16> to vector<12x16x32xbf16>
    %c0_12 = arith.constant 0 : index
    %c0_13 = arith.constant 0 : index
    %c0_14 = arith.constant 0 : index
    %c0_15 = arith.constant 0 : index
    %34 = vector.load %arg6[%c0_12, %c0_13, %c0_14, %c0_15] : memref<1x12x32x8xbf16, #tpu.memory_space<vmem>>, vector<1x12x32x8xbf16>
    %35 = vector.shape_cast %34 : vector<1x12x32x8xbf16> to vector<12x32x8xbf16>
    %cst_16 = arith.constant dense<0.000000e+00> : vector<12x16x8xf32>
    %36 = tpu.matmul %33, %35, %cst_16 {dimension_numbers = #tpu.dot_dimension_numbers<[2], [1], [1], [2], [0, 0, 0, 1, 1, 2], [0], [0]>} : vector<12x16x32xbf16>, vector<12x32x8xbf16>, vector<12x16x8xf32> -> vector<12x16x8xf32>
    %37 = vector.extract_strided_slice %36 {offsets = [0, 0, 0], sizes = [4, 16, 8], strides = [1, 1, 1]} : vector<12x16x8xf32> to vector<4x16x8xf32>
    %38 = arith.truncf %37 : vector<4x16x8xf32> to vector<4x16x8xbf16>
    %39 = vector.extract_strided_slice %36 {offsets = [4, 0, 0], sizes = [4, 16, 8], strides = [1, 1, 1]} : vector<12x16x8xf32> to vector<4x16x8xf32>
    %40 = arith.truncf %39 : vector<4x16x8xf32> to vector<4x16x8xbf16>
    %41 = vector.extract_strided_slice %36 {offsets = [8, 0, 0], sizes = [4, 16, 8], strides = [1, 1, 1]} : vector<12x16x8xf32> to vector<4x16x8xf32>
    %42 = arith.truncf %41 : vector<4x16x8xf32> to vector<4x16x8xbf16>
    %cst_17 = arith.constant dense<0.000000e+00> : vector<4x16x16xf32>
    %43 = tpu.matmul %38, %40, %cst_17 {dimension_numbers = #tpu.dot_dimension_numbers<[2], [2], [1], [1], [0, 0, 0, 1, 1, 1], [0], [0]>} : vector<4x16x8xbf16>, vector<4x16x8xbf16>, vector<4x16x16xf32> -> vector<4x16x16xf32>
    %cst_18 = arith.constant 0.353553385 : f32
    %44 = vector.broadcast %cst_18 : f32 to vector<4x16x16xf32>
    %45 = arith.mulf %43, %44 : vector<4x16x16xf32>
    %c0_19 = arith.constant 0 : index
    %c0_20 = arith.constant 0 : index
    %46 = vector.load %arg3[%c0_19, %c0_20] : memref<16x16xf32, #tpu.memory_space<vmem>>, vector<16x16xf32>
    %47 = vector.shape_cast %46 : vector<16x16xf32> to vector<1x16x16xf32>
    %48 = vector.broadcast %47 : vector<1x16x16xf32> to vector<4x16x16xf32>
    %49 = arith.addf %45, %48 : vector<4x16x16xf32>
    %cst_21 = arith.constant dense<0xFF800000> : vector<4x16xf32>
    %50 = vector.multi_reduction <maximumf>, %49, %cst_21 [2] : vector<4x16x16xf32> to vector<4x16xf32>
    %51 = vector.shape_cast %50 : vector<4x16xf32> to vector<4x16x1xf32>
    %52 = vector.broadcast %51 : vector<4x16x1xf32> to vector<4x16x16xf32>
    %53 = arith.subf %49, %52 : vector<4x16x16xf32>
    %54 = math.exp %53 : vector<4x16x16xf32>
    %cst_22 = arith.constant dense<0.000000e+00> : vector<4x16xf32>
    %55 = vector.multi_reduction <add>, %54, %cst_22 [2] : vector<4x16x16xf32> to vector<4x16xf32>
    %56 = vector.shape_cast %55 : vector<4x16xf32> to vector<4x16x1xf32>
    %57 = vector.broadcast %56 : vector<4x16x1xf32> to vector<4x16x16xf32>
    %58 = arith.divf %54, %57 : vector<4x16x16xf32>
    %59 = arith.truncf %58 : vector<4x16x16xf32> to vector<4x16x16xbf16>
    %cst_23 = arith.constant dense<0.000000e+00> : vector<4x16x8xf32>
    %60 = tpu.matmul %59, %42, %cst_23 {dimension_numbers = #tpu.dot_dimension_numbers<[2], [1], [1], [2], [0, 0, 0, 1, 1, 2], [0], [0]>} : vector<4x16x16xbf16>, vector<4x16x8xbf16>, vector<4x16x8xf32> -> vector<4x16x8xf32>
    %61 = arith.truncf %60 : vector<4x16x8xf32> to vector<4x16x8xbf16>
    %c0_24 = arith.constant 0 : index
    %c0_25 = arith.constant 0 : index
    %c0_26 = arith.constant 0 : index
    %c0_27 = arith.constant 0 : index
    %62 = vector.load %arg7[%c0_24, %c0_25, %c0_26, %c0_27] : memref<1x4x8x32xbf16, #tpu.memory_space<vmem>>, vector<1x4x8x32xbf16>
    %63 = vector.shape_cast %62 : vector<1x4x8x32xbf16> to vector<4x8x32xbf16>
    %cst_28 = arith.constant dense<0.000000e+00> : vector<4x16x32xf32>
    %64 = tpu.matmul %61, %63, %cst_28 {dimension_numbers = #tpu.dot_dimension_numbers<[2], [1], [1], [2], [0, 0, 0, 1, 1, 2], [0], [0]>} : vector<4x16x8xbf16>, vector<4x8x32xbf16>, vector<4x16x32xf32> -> vector<4x16x32xf32>
    %cst_29 = arith.constant dense<0.000000e+00> : vector<16x32xf32>
    %65 = vector.multi_reduction <add>, %64, %cst_29 [0] : vector<4x16x32xf32> to vector<16x32xf32>
    %66 = arith.addf %3, %65 : vector<16x32xf32>
    %c0_30 = arith.constant 0 : index
    %c0_31 = arith.constant 0 : index
    %c0_32 = arith.constant 0 : index
    %67 = vector.load %arg8[%c0_30, %c0_31, %c0_32] : memref<1x1x32xf32, #tpu.memory_space<vmem>>, vector<1x1x32xf32>
    %68 = vector.shape_cast %67 : vector<1x1x32xf32> to vector<1x32xf32>
    %69 = vector.broadcast %68 : vector<1x32xf32> to vector<16x32xf32>
    %70 = arith.addf %66, %69 : vector<16x32xf32>
    %c0_33 = arith.constant 0 : index
    %c0_34 = arith.constant 0 : index
    %c0_35 = arith.constant 0 : index
    %71 = vector.load %arg9[%c0_33, %c0_34, %c0_35] : memref<1x1x32xf32, #tpu.memory_space<vmem>>, vector<1x1x32xf32>
    %72 = vector.shape_cast %71 : vector<1x1x32xf32> to vector<1x32xf32>
    %c0_36 = arith.constant 0 : index
    %c0_37 = arith.constant 0 : index
    %c0_38 = arith.constant 0 : index
    %73 = vector.load %arg10[%c0_36, %c0_37, %c0_38] : memref<1x1x32xf32, #tpu.memory_space<vmem>>, vector<1x1x32xf32>
    %74 = vector.shape_cast %73 : vector<1x1x32xf32> to vector<1x32xf32>
    %cst_39 = arith.constant dense<0.000000e+00> : vector<16xf32>
    %75 = vector.multi_reduction <add>, %70, %cst_39 [1] : vector<16x32xf32> to vector<16xf32>
    %76 = vector.shape_cast %75 : vector<16xf32> to vector<16x1xf32>
    %cst_40 = arith.constant 3.200000e+01 : f32
    %77 = vector.broadcast %cst_40 : f32 to vector<16x1xf32>
    %78 = arith.divf %76, %77 : vector<16x1xf32>
    %79 = vector.broadcast %78 : vector<16x1xf32> to vector<16x32xf32>
    %80 = arith.subf %70, %79 : vector<16x32xf32>
    %81 = arith.mulf %80, %80 : vector<16x32xf32>
    %cst_41 = arith.constant dense<0.000000e+00> : vector<16xf32>
    %82 = vector.multi_reduction <add>, %81, %cst_41 [1] : vector<16x32xf32> to vector<16xf32>
    %83 = vector.shape_cast %82 : vector<16xf32> to vector<16x1xf32>
    %cst_42 = arith.constant 3.200000e+01 : f32
    %84 = vector.broadcast %cst_42 : f32 to vector<16x1xf32>
    %85 = arith.divf %83, %84 : vector<16x1xf32>
    %86 = vector.broadcast %78 : vector<16x1xf32> to vector<16x32xf32>
    %87 = arith.subf %70, %86 : vector<16x32xf32>
    %cst_43 = arith.constant 9.99999974E-6 : f32
    %88 = vector.broadcast %cst_43 : f32 to vector<16x1xf32>
    %89 = arith.addf %85, %88 : vector<16x1xf32>
    %90 = math.rsqrt %89 : vector<16x1xf32>
    %91 = vector.broadcast %90 : vector<16x1xf32> to vector<16x32xf32>
    %92 = arith.mulf %87, %91 : vector<16x32xf32>
    %93 = vector.broadcast %72 : vector<1x32xf32> to vector<16x32xf32>
    %94 = arith.mulf %92, %93 : vector<16x32xf32>
    %95 = vector.broadcast %74 : vector<1x32xf32> to vector<16x32xf32>
    %96 = arith.addf %94, %95 : vector<16x32xf32>
    %97 = arith.truncf %96 : vector<16x32xf32> to vector<16x32xbf16>
    %c0_44 = arith.constant 0 : index
    %c0_45 = arith.constant 0 : index
    %c0_46 = arith.constant 0 : index
    %98 = vector.load %arg11[%c0_44, %c0_45, %c0_46] : memref<1x32x128xbf16, #tpu.memory_space<vmem>>, vector<1x32x128xbf16>
    %99 = vector.shape_cast %98 : vector<1x32x128xbf16> to vector<32x128xbf16>
    %cst_47 = arith.constant dense<0.000000e+00> : vector<16x128xf32>
    %100 = tpu.matmul %97, %99, %cst_47 {dimension_numbers = #tpu.dot_dimension_numbers<[1], [0], [0], [1], [0, 0, 1, 1], [], []>} : vector<16x32xbf16>, vector<32x128xbf16>, vector<16x128xf32> -> vector<16x128xf32>
    %c0_48 = arith.constant 0 : index
    %c0_49 = arith.constant 0 : index
    %c0_50 = arith.constant 0 : index
    %101 = vector.load %arg12[%c0_48, %c0_49, %c0_50] : memref<1x1x128xf32, #tpu.memory_space<vmem>>, vector<1x1x128xf32>
    %102 = vector.shape_cast %101 : vector<1x1x128xf32> to vector<1x128xf32>
    %103 = vector.broadcast %102 : vector<1x128xf32> to vector<16x128xf32>
    %104 = arith.addf %100, %103 : vector<16x128xf32>
    %cst_51 = arith.constant 5.000000e-01 : f32
    %105 = vector.broadcast %cst_51 : f32 to vector<16x128xf32>
    %106 = arith.mulf %105, %104 : vector<16x128xf32>
    %cst_52 = arith.constant 4.471500e-02 : f32
    %107 = vector.broadcast %cst_52 : f32 to vector<16x128xf32>
    %108 = arith.mulf %107, %104 : vector<16x128xf32>
    %109 = arith.mulf %108, %104 : vector<16x128xf32>
    %110 = arith.mulf %109, %104 : vector<16x128xf32>
    %111 = arith.addf %104, %110 : vector<16x128xf32>
    %cst_53 = arith.constant 0.797884583 : f32
    %112 = vector.broadcast %cst_53 : f32 to vector<16x128xf32>
    %113 = arith.mulf %112, %111 : vector<16x128xf32>
    %114 = math.tanh %113 : vector<16x128xf32>
    %cst_54 = arith.constant 1.000000e+00 : f32
    %115 = vector.broadcast %cst_54 : f32 to vector<16x128xf32>
    %116 = arith.addf %115, %114 : vector<16x128xf32>
    %117 = arith.mulf %106, %116 : vector<16x128xf32>
    %118 = arith.truncf %117 : vector<16x128xf32> to vector<16x128xbf16>
    %c0_55 = arith.constant 0 : index
    %c0_56 = arith.constant 0 : index
    %c0_57 = arith.constant 0 : index
    %119 = vector.load %arg13[%c0_55, %c0_56, %c0_57] : memref<1x128x32xbf16, #tpu.memory_space<vmem>>, vector<1x128x32xbf16>
    %120 = vector.shape_cast %119 : vector<1x128x32xbf16> to vector<128x32xbf16>
    %cst_58 = arith.constant dense<0.000000e+00> : vector<16x32xf32>
    %121 = tpu.matmul %118, %120, %cst_58 {dimension_numbers = #tpu.dot_dimension_numbers<[1], [0], [0], [1], [0, 0, 1, 1], [], []>} : vector<16x128xbf16>, vector<128x32xbf16>, vector<16x32xf32> -> vector<16x32xf32>
    %c0_59 = arith.constant 0 : index
    %c0_60 = arith.constant 0 : index
    %c0_61 = arith.constant 0 : index
    %122 = vector.load %arg14[%c0_59, %c0_60, %c0_61] : memref<1x1x32xf32, #tpu.memory_space<vmem>>, vector<1x1x32xf32>
    %123 = vector.shape_cast %122 : vector<1x1x32xf32> to vector<1x32xf32>
    %124 = vector.broadcast %123 : vector<1x32xf32> to vector<16x32xf32>
    %125 = arith.addf %121, %124 : vector<16x32xf32>
    %126 = arith.addf %70, %125 : vector<16x32xf32>
    %c0_62 = arith.constant 0 : index
    %c0_63 = arith.constant 0 : index
    %127 = vector.load %arg16[%c0_62, %c0_63] : memref<16x32xf32, #tpu.memory_space<vmem>>, vector<16x32xf32>
    tpu.vector_store %arg16[%c0_62, %c0_63], %126 {strides = array<i32>} : memref<16x32xf32, #tpu.memory_space<vmem>>, vector<16x32xf32>,
    %c1_i32 = arith.constant 1 : i32
    %128 = arith.cmpi eq, %arg1, %c1_i32 : i32
    %129 = arith.extui %128 : i1 to i32
    %c0_i32_64 = arith.constant 0 : i32
    %130 = arith.cmpi ne, %129, %c0_i32_64 : i32
    scf.if %130 {
      %c0_65 = arith.constant 0 : index
      %c0_66 = arith.constant 0 : index
      %131 = vector.load %arg15[%c0_65, %c0_66] : memref<16x32xf32, #tpu.memory_space<vmem>>, vector<16x32xf32>
      tpu.vector_store %arg15[%c0_65, %c0_66], %126 {strides = array<i32>} : memref<16x32xf32, #tpu.memory_space<vmem>>, vector<16x32xf32>,
    } else {
    }
    return
  }
  func.func @transform_0(%arg0: i32, %arg1: i32) -> (i32, i32) {
    %c0_i32 = arith.constant 0 : i32
    %c0_i32_0 = arith.constant 0 : i32
    return %arg0, %c0_i32 : i32, i32
  }
  func.func @transform_1(%arg0: i32, %arg1: i32) -> (i32, i32) {
    %c0_i32 = arith.constant 0 : i32
    %c0_i32_0 = arith.constant 0 : i32
    %c0_i32_1 = arith.constant 0 : i32
    return %c0_i32, %c0_i32_0 : i32, i32
  }
  func.func @transform_2(%arg0: i32, %arg1: i32) -> (i32, i32, i32) {
    %c0_i32 = arith.constant 0 : i32
    %c0_i32_0 = arith.constant 0 : i32
    %c0_i32_1 = arith.constant 0 : i32
    return %arg1, %c0_i32, %c0_i32_0 : i32, i32, i32
  }
  func.func @transform_3(%arg0: i32, %arg1: i32) -> (i32, i32, i32) {
    %c0_i32 = arith.constant 0 : i32
    %c0_i32_0 = arith.constant 0 : i32
    %c0_i32_1 = arith.constant 0 : i32
    return %arg1, %c0_i32, %c0_i32_0 : i32, i32, i32
  }
  func.func @transform_4(%arg0: i32, %arg1: i32) -> (i32, i32, i32, i32) {
    %c0_i32 = arith.constant 0 : i32
    %c0_i32_0 = arith.constant 0 : i32
    %c0_i32_1 = arith.constant 0 : i32
    %c0_i32_2 = arith.constant 0 : i32
    return %arg1, %c0_i32, %c0_i32_0, %c0_i32_1 : i32, i32, i32, i32
  }
  func.func @transform_5(%arg0: i32, %arg1: i32) -> (i32, i32, i32, i32) {
    %c0_i32 = arith.constant 0 : i32
    %c0_i32_0 = arith.constant 0 : i32
    %c0_i32_1 = arith.constant 0 : i32
    %c0_i32_2 = arith.constant 0 : i32
    return %arg1, %c0_i32, %c0_i32_0, %c0_i32_1 : i32, i32, i32, i32
  }
  func.func @transform_6(%arg0: i32, %arg1: i32) -> (i32, i32, i32) {
    %c0_i32 = arith.constant 0 : i32
    %c0_i32_0 = arith.constant 0 : i32
    %c0_i32_1 = arith.constant 0 : i32
    return %arg1, %c0_i32, %c0_i32_0 : i32, i32, i32
  }
  func.func @transform_7(%arg0: i32, %arg1: i32) -> (i32, i32, i32) {
    %c0_i32 = arith.constant 0 : i32
    %c0_i32_0 = arith.constant 0 : i32
    %c0_i32_1 = arith.constant 0 : i32
    return %arg1, %c0_i32, %c0_i32_0 : i32, i32, i32
  }
  func.func @transform_8(%arg0: i32, %arg1: i32) -> (i32, i32, i32) {
    %c0_i32 = arith.constant 0 : i32
    %c0_i32_0 = arith.constant 0 : i32
    %c0_i32_1 = arith.constant 0 : i32
    return %arg1, %c0_i32, %c0_i32_0 : i32, i32, i32
  }
  func.func @transform_9(%arg0: i32, %arg1: i32) -> (i32, i32, i32) {
    %c0_i32 = arith.constant 0 : i32
    %c0_i32_0 = arith.constant 0 : i32
    %c0_i32_1 = arith.constant 0 : i32
    return %arg1, %c0_i32, %c0_i32_0 : i32, i32, i32
  }
  func.func @transform_10(%arg0: i32, %arg1: i32) -> (i32, i32, i32) {
    %c0_i32 = arith.constant 0 : i32
    %c0_i32_0 = arith.constant 0 : i32
    %c0_i32_1 = arith.constant 0 : i32
    return %arg1, %c0_i32, %c0_i32_0 : i32, i32, i32
  }
  func.func @transform_11(%arg0: i32, %arg1: i32) -> (i32, i32, i32) {
    %c0_i32 = arith.constant 0 : i32
    %c0_i32_0 = arith.constant 0 : i32
    %c0_i32_1 = arith.constant 0 : i32
    return %arg1, %c0_i32, %c0_i32_0 : i32, i32, i32
  }
  func.func @transform_12(%arg0: i32, %arg1: i32) -> (i32, i32, i32) {
    %c0_i32 = arith.constant 0 : i32
    %c0_i32_0 = arith.constant 0 : i32
    %c0_i32_1 = arith.constant 0 : i32
    return %arg1, %c0_i32, %c0_i32_0 : i32, i32, i32
  }
  func.func @transform_13(%arg0: i32, %arg1: i32) -> (i32, i32) {
    %c0_i32 = arith.constant 0 : i32
    %c0_i32_0 = arith.constant 0 : i32
    return %arg0, %c0_i32 : i32, i32
  }
}

</mosaic_0001>

<llo_original>
// kernel: _lambda_.3
$region0: #{_lambda_.3}
  #allocation0 [shape = 'u32[]', space=smem, size = 0x4, offset = 0x4, fixed_abs, tag = 'smem constant byte address 0x4 - core index']
  #allocation1 [shape = 'u32[72,128]{1,0:T(1,128)}', space=vmem, size = 0x9000, scoped, tag = 'internal scratch']
  %s0 = inlined_call_operand.vmem [shape: f32[32,32], index: 0, kind: input, shape index: {}]
  %s1 = inlined_call_operand.vmem [shape: f32[1,32], index: 1, kind: input, shape index: {}]
  %s2 = inlined_call_operand.vmem [shape: f32[1,32], index: 2, kind: input, shape index: {}]
  %s3 = inlined_call_operand.vmem [shape: bf16[32,128], index: 3, kind: input, shape index: {}]
  %s4 = inlined_call_operand.vmem [shape: f32[1,128], index: 4, kind: input, shape index: {}]
  %s5 = inlined_call_operand.vmem [shape: f32[32,128], index: 5, kind: output, shape index: {}]
  %s6 = sld [smem:[#allocation0]]
  $region53: #{_lambda_.3} parent=0
    _
  %s8 = ssub.s32 1, %s6
  %s9 = scalar_select 0, %s8, %s6
  loop: start=0, step=1, limit=4
  $region2: #{_lambda_.3} parent=0 // loop_pre_header
    _
  $region3: #{_lambda_.3} parent=0 // loop_header
    %s11 = sphi 0, %s15
    %p12 = scmp.ge.s32.totalorder %s11, 4
    %s18 = sphi 0, %s30
    %s19 = sphi 0, %s26
    %s20 = sphi 0, %s18
    %s21 = sphi 0, %s19
    %s22 = sphi 0, %s20
    %s23 = sphi 0, %s21
    %s33 = sphi 0, %s35
    %s36 = sphi 0, %s33
    %s37 = sphi 0, %s36
    %s53 = sphi 0, %s37
    %s57 = sphi 0, %s57
    %s59 = sphi 0, %s57
    %s60 = sphi 0, %s59
    %s74 = sphi 0, %s60
    %s78 = sphi 0, %s78
    %s80 = sphi 0, %s78
    %s81 = sphi 0, %s80
    %s95 = sphi 0, %s81
    %s101 = sphi 0, %s103
    %s104 = sphi 0, %s101
    %s105 = sphi 0, %s104
    %s121 = sphi 0, %s105
    %s127 = sphi 0, %s129
    %s130 = sphi 0, %s127
    %s131 = sphi 0, %s130
    %s147 = sphi 0, %s131
    %s155 = sphi 0, %s157
    %s158 = sphi 0, %s155
    %s159 = sphi 0, %s158
    %s175 = sphi 0, %s159
  $region4: #{_lambda_.3} parent=0 // loop_header_branch
    %14 = sbr.rel (%p12) target = $region8
  $region5: #{_lambda_.3} parent=0 // loop_body
    %s16 = ssub.s32 %s11, 1
    %s17 = ssub.s32 %s11, 2
    %s24 = sadd.s32 1, %s19
    %p25 = scmp.ge.s32.totalorder %s24, 1
    %s26 = scalar_select %p25, 0, %s24
    %s27 = sadd.s32 1, %s18
    %s28 = scalar_select %p25, %s27, %s18
    %p29 = scmp.ge.s32.totalorder %s28, 2
    %s30 = scalar_select %p29, 0, %s28
    %s31 = ssub.s32 %s18, %s30
    %p32 = scmp.eq.s32.totalorder %s31, 0
    %s34 = sadd.s32 %s33, 1
    %s35 = scalar_select %p32, %s33, %s34
    %p38 = pneg %p32
    %p39 = scmp.eq.s32.totalorder %s11, 1
    %p40 = por %p38, %p39
    %p41 = scmp.ne.s32.totalorder %s33, %s36
    %p42 = scmp.eq.s32.totalorder %s11, 0
    %p43 = por %p41, %p42
    %p44 = scmp.ne.s32.totalorder %s33, %s36
    %p45 = scmp.eq.s32.totalorder %s16, 1
    %p46 = por %p44, %p45
    %p47 = scmp.ne.s32.totalorder %s36, %s37
    %p48 = scmp.eq.s32.totalorder %s16, 0
    %p49 = por %p47, %p48
    %p50 = scmp.ne.s32.totalorder %s36, %s37
    %p51 = scmp.eq.s32.totalorder %s17, 1
    %p52 = por %p50, %p51
    %p54 = scmp.ne.s32.totalorder %s37, %s53
    %p55 = scmp.eq.s32.totalorder %s17, 0
    %p56 = por %p54, %p55
    %s58 = sadd.s32 %s57, 1
    %p61 = scmp.eq.s32.totalorder %s11, 1
    %p62 = scmp.ne.s32.totalorder %s57, %s59
    %p63 = scmp.eq.s32.totalorder %s11, 0
    %p64 = por %p62, %p63
    %p65 = scmp.ne.s32.totalorder %s57, %s59
    %p66 = scmp.eq.s32.totalorder %s16, 1
    %p67 = por %p65, %p66
    %p68 = scmp.ne.s32.totalorder %s59, %s60
    %p69 = scmp.eq.s32.totalorder %s16, 0
    %p70 = por %p68, %p69
    %p71 = scmp.ne.s32.totalorder %s59, %s60
    %p72 = scmp.eq.s32.totalorder %s17, 1
    %p73 = por %p71, %p72
    %p75 = scmp.ne.s32.totalorder %s60, %s74
    %p76 = scmp.eq.s32.totalorder %s17, 0
    %p77 = por %p75, %p76
    %s79 = sadd.s32 %s78, 1
    %p82 = scmp.eq.s32.totalorder %s11, 1
    %p83 = scmp.ne.s32.totalorder %s78, %s80
    %p84 = scmp.eq.s32.totalorder %s11, 0
    %p85 = por %p83, %p84
    %p86 = scmp.ne.s32.totalorder %s78, %s80
    %p87 = scmp.eq.s32.totalorder %s16, 1
    %p88 = por %p86, %p87
    %p89 = scmp.ne.s32.totalorder %s80, %s81
    %p90 = scmp.eq.s32.totalorder %s16, 0
    %p91 = por %p89, %p90
    %p92 = scmp.ne.s32.totalorder %s80, %s81
    %p93 = scmp.eq.s32.totalorder %s17, 1
    %p94 = por %p92, %p93
    %p96 = scmp.ne.s32.totalorder %s81, %s95
    %p97 = scmp.eq.s32.totalorder %s17, 0
    %p98 = por %p96, %p97
    %s99 = ssub.s32 %s19, %s26
    %p100 = scmp.eq.s32.totalorder %s99, 0
    %s102 = sadd.s32 %s101, 1
    %s103 = scalar_select %p100, %s101, %s102
    %p106 = pneg %p100
    %p107 = scmp.eq.s32.totalorder %s11, 1
    %p108 = por %p106, %p107
    %p109 = scmp.ne.s32.totalorder %s101, %s104
    %p110 = scmp.eq.s32.totalorder %s11, 0
    %p111 = por %p109, %p110
    %p112 = scmp.ne.s32.totalorder %s101, %s104
    %p113 = scmp.eq.s32.totalorder %s16, 1
    %p114 = por %p112, %p113
    %p115 = scmp.ne.s32.totalorder %s104, %s105
    %p116 = scmp.eq.s32.totalorder %s16, 0
    %p117 = por %p115, %p116
    %p118 = scmp.ne.s32.totalorder %s104, %s105
    %p119 = scmp.eq.s32.totalorder %s17, 1
    %p120 = por %p118, %p119
    %p122 = scmp.ne.s32.totalorder %s105, %s121
    %p123 = scmp.eq.s32.totalorder %s17, 0
    %p124 = por %p122, %p123
    %s125 = ssub.s32 %s19, %s26
    %p126 = scmp.eq.s32.totalorder %s125, 0
    %s128 = sadd.s32 %s127, 1
    %s129 = scalar_select %p126, %s127, %s128
    %p132 = pneg %p126
    %p133 = scmp.eq.s32.totalorder %s11, 1
    %p134 = por %p132, %p133
    %p135 = scmp.ne.s32.totalorder %s127, %s130
    %p136 = scmp.eq.s32.totalorder %s11, 0
    %p137 = por %p135, %p136
    %p138 = scmp.ne.s32.totalorder %s127, %s130
    %p139 = scmp.eq.s32.totalorder %s16, 1
    %p140 = por %p138, %p139
    %p141 = scmp.ne.s32.totalorder %s130, %s131
    %p142 = scmp.eq.s32.totalorder %s16, 0
    %p143 = por %p141, %p142
    %p144 = scmp.ne.s32.totalorder %s130, %s131
    %p145 = scmp.eq.s32.totalorder %s17, 1
    %p146 = por %p144, %p145
    %p148 = scmp.ne.s32.totalorder %s131, %s147
    %p149 = scmp.eq.s32.totalorder %s17, 0
    %p150 = por %p148, %p149
    %s151 = ssub.s32 %s18, %s30
    %s152 = ssub.s32 %s19, %s26
    %s153 = sor.u32 %s151, %s152
    %p154 = scmp.eq.s32.totalorder %s153, 0
    %s156 = sadd.s32 %s155, 1
    %s157 = scalar_select %p154, %s155, %s156
    %p160 = pneg %p154
    %p161 = scmp.eq.s32.totalorder %s11, 1
    %p162 = por %p160, %p161
    %p163 = scmp.ne.s32.totalorder %s155, %s158
    %p164 = scmp.eq.s32.totalorder %s11, 0
    %p165 = por %p163, %p164
    %p166 = scmp.ne.s32.totalorder %s155, %s158
    %p167 = scmp.eq.s32.totalorder %s16, 1
    %p168 = por %p166, %p167
    %p169 = scmp.ne.s32.totalorder %s158, %s159
    %p170 = scmp.eq.s32.totalorder %s16, 0
    %p171 = por %p169, %p170
    %p172 = scmp.ne.s32.totalorder %s158, %s159
    %p173 = scmp.eq.s32.totalorder %s17, 1
    %p174 = por %p172, %p173
    %p176 = scmp.ne.s32.totalorder %s159, %s175
    %p177 = scmp.eq.s32.totalorder %s17, 0
    %p178 = por %p176, %p177
    %p179 = scmp.le.s32.totalorder 1, %s11
    %p180 = scmp.lt.s32.totalorder %s11, 3
    %p181 = pnand %p179, %p180
    %p182 = pneg %p181
    // Predicated region
    $region9: #{_lambda_.3} parent=5 // pred_check
      _
    $region10: #{_lambda_.3} parent=5 // pred_check_branch
      %184 = sbr.rel (%p181) target = $region12
    $region11: #{_lambda_.3} parent=5 // pred_region
      %s185 = ssub.s32 %s11, 1
      // Predicated region
      $region13: #{_lambda_.3} parent=11 // pred_check
        %p186 = pneg %p70
      $region14: #{_lambda_.3} parent=11 // pred_check_branch
        %188 = sbr.rel (%p186) target = $region16
      $region15: #{_lambda_.3} parent=11 // pred_region
        _
      $region16: #{_lambda_.3} parent=11 // pred_fallthru
        _
      // Predicated region
      $region17: #{_lambda_.3} parent=11 // pred_check
        %p189 = pneg %p91
      $region18: #{_lambda_.3} parent=11 // pred_check_branch
        %191 = sbr.rel (%p189) target = $region20
      $region19: #{_lambda_.3} parent=11 // pred_region
        _
      $region20: #{_lambda_.3} parent=11 // pred_fallthru
        _
      // Predicated region
      $region21: #{_lambda_.3} parent=11 // pred_check
        %p192 = pneg %p117
      $region22: #{_lambda_.3} parent=11 // pred_check_branch
        %194 = sbr.rel (%p192) target = $region24
      $region23: #{_lambda_.3} parent=11 // pred_region
        %p195 = scmp.lt.s32.totalorder %s21, 0
        %s196 = scalar_select %p195, %s21, 0
        %s197 = smul.addr %s196, 4
        %s198 = scalar_lea.vmem %s3, %s197
      $region24: #{_lambda_.3} parent=11 // pred_fallthru
        _
      // Predicated region
      $region25: #{_lambda_.3} parent=11 // pred_check
        %p199 = pneg %p143
      $region26: #{_lambda_.3} parent=11 // pred_check_branch
        %201 = sbr.rel (%p199) target = $region28
      $region27: #{_lambda_.3} parent=11 // pred_region
        %p202 = scmp.lt.s32.totalorder %s21, 0
        %s203 = scalar_select %p202, %s21, 0
        %s204 = scalar_lea.vmem %s4, %s203
      $region28: #{_lambda_.3} parent=11 // pred_fallthru
        _
    $region12: #{_lambda_.3} parent=5 // pred_fallthru
      _
    %p205 = scmp.lt.s32.totalorder %s11, 2
    // Predicated region
    $region29: #{_lambda_.3} parent=5 // pred_check
      %p206 = pneg %p205
    $region30: #{_lambda_.3} parent=5 // pred_check_branch
      %208 = sbr.rel (%p206) target = $region32
    $region31: #{_lambda_.3} parent=5 // pred_region
      // Predicated region
      $region33: #{_lambda_.3} parent=31 // pred_check
        %p209 = pneg %p43
      $region34: #{_lambda_.3} parent=31 // pred_check_branch
        %211 = sbr.rel (%p209) target = $region36
      $region35: #{_lambda_.3} parent=31 // pred_region
        %s212 = smul.u32 2, %s18
        %p213 = scmp.lt.s32.totalorder %s212, 3
        %s214 = scalar_select %p213, %s212, 3
        %s215 = smul.addr %s214, 8
        %s216 = scalar_lea.vmem %s0, %s215
        %s217 = smul.u32 2, %s18
      $region36: #{_lambda_.3} parent=31 // pred_fallthru
        _
    $region32: #{_lambda_.3} parent=5 // pred_fallthru
      _
    %p218 = scmp.le.s32.totalorder 1, %s11
    %p219 = scmp.lt.s32.totalorder %s11, 3
    %p220 = pnand %p218, %p219
    %p221 = pneg %p220
    // Predicated region
    $region37: #{_lambda_.3} parent=5 // pred_check
      _
    $region38: #{_lambda_.3} parent=5 // pred_check_branch
      %223 = sbr.rel (%p220) target = $region40
    $region39: #{_lambda_.3} parent=5 // pred_region
      %s224 = ssub.s32 %s11, 1
      %s225 = smul.u32 2, %s20
      %p226 = scmp.lt.s32.totalorder %s225, 3
      %s227 = scalar_select %p226, %s225, 3
      %s228 = smul.addr %s227, 8
      %s229 = scalar_lea.vmem %s0, %s228
      %p230 = pneg %p49
      %p231 = pneg %p46
      %p232 = pneg %p70
      %p233 = pneg %p67
      %p234 = pneg %p91
      %p235 = pneg %p88
      %p236 = scmp.lt.s32.totalorder %s21, 0
      %s237 = scalar_select %p236, %s21, 0
      %s238 = smul.addr %s237, 4
      %s239 = scalar_lea.vmem %s3, %s238
      %p240 = pneg %p117
      %p241 = pneg %p114
      %p242 = scmp.lt.s32.totalorder %s21, 0
      %s243 = scalar_select %p242, %s21, 0
      %s244 = scalar_lea.vmem %s4, %s243
      %p245 = pneg %p143
      %p246 = pneg %p140
      %p247 = pneg %p171
      %p248 = pneg %p168
      %s249 = smul.u32 2, %s20
      %p250 = scmp.lt.s32.totalorder %s249, 3
      %s251 = scalar_select %p250, %s249, 3
      %p252 = scmp.lt.s32.totalorder %s21, 0
      %s253 = scalar_select %p252, %s21, 0
      %s254 = sadd.s32 %s253, %s251
      %s255 = smul.addr %s254, 8
      %s256 = scalar_lea.vmem %s5, %s255
      %s257 = smul.u32 2, %s20
      %p258 = scmp.lt.s32.totalorder %s257, 3
      %s259 = scalar_select %p258, %s257, 3
      %s260 = smul.addr %s259, 8
      %s261 = scalar_lea.vmem %s0, %s260
      %s262 = smul.u32 2, %s20
      %p263 = scmp.lt.s32.totalorder %s21, 0
      %s264 = scalar_select %p263, %s21, 0
      %s265 = smul.addr %s264, 4
      %s266 = scalar_lea.vmem %s3, %s265
      %p267 = scmp.lt.s32.totalorder %s21, 0
      %s268 = scalar_select %p267, %s21, 0
      %s269 = scalar_lea.vmem %s4, %s268
      %s270 = smul.u32 2, %s20
      %p271 = scmp.lt.s32.totalorder %s270, 3
      %s272 = scalar_select %p271, %s270, 3
      %p273 = scmp.lt.s32.totalorder %s21, 0
      %s274 = scalar_select %p273, %s21, 0
      %s275 = sadd.s32 %s274, %s272
      %s276 = smul.addr %s275, 8
      %s277 = scalar_lea.vmem %s5, %s276
      %s278 = smul.u32 2, %s20
      %v280 = vld [vmem:[%s261] sm:$0xff]
      %v281 = vld [vmem:[%s261 + $0x8] sm:$0xff]
      %v282 = vld [vmem:[%s1] sm:$0x1]
      %v283 = vld [vmem:[%s2] sm:$0x1]
      %vm284 = vcmask 261120
      %v285 = vsel %vm284, %v280, 0.0
      %286 = vadd.xlane.f32.xlu0 %v285
      %v287 = vpop.xlane.xlu0 %286
      %v288 = vsel %vm284, %v281, 0.0
      %289 = vadd.xlane.f32.xlu0 %v288
      %v290 = vpop.xlane.xlu0 %289
      %v291 = vrcp.pop 32.0
      %v292 = vmul.f32 32.0, %v291
      %v293 = vsub.f32 1.0, %v292
      %v294 = vmul.f32 %v291, %v293
      %v295 = vadd.f32 %v291, %v294
      %vm296 = vweird.f32 %v291
      %v297 = vsel %vm296, %v291, %v295
      %v298 = vmul.f32 %v287, %v297
      %v299 = vmul.f32 %v290, %v297
      %v300 = vsub.f32 %v280, %v298
      %v301 = vsub.f32 %v281, %v299
      %v302 = vmul.f32 %v300, %v300
      %v303 = vmul.f32 %v301, %v301
      %v304 = vsel %vm284, %v302, 0.0
      %305 = vadd.xlane.f32.xlu0 %v304
      %v306 = vpop.xlane.xlu0 %305
      %v307 = vsel %vm284, %v303, 0.0
      %308 = vadd.xlane.f32.xlu0 %v307
      %v309 = vpop.xlane.xlu0 %308
      %v310 = vmul.f32 %v306, %v297
      %v311 = vmul.f32 %v309, %v297
      %v312 = vadd.f32 %v310, 1e-05
      %v313 = vadd.f32 %v311, 1e-05
      %v314 = vrsqrt.pop %v312
      %v315 = vmul.f32 %v314, %v312
      %v316 = vmul.f32 %v315, %v314
      %v317 = vmul.f32 0.5, %v316
      %v318 = vsub.f32 1.5, %v317
      %v319 = vmul.f32 %v314, %v318
      %vm320 = vweird.f32 %v312
      %vm321 = vweird.f32 %v314
      %vm322 = vmor %vm320, %vm321
      %v323 = vsel %vm322, %v314, %v319
      %v324 = vrsqrt.pop %v313
      %v325 = vmul.f32 %v324, %v313
      %v326 = vmul.f32 %v325, %v324
      %v327 = vmul.f32 0.5, %v326
      %v328 = vsub.f32 1.5, %v327
      %v329 = vmul.f32 %v324, %v328
      %vm330 = vweird.f32 %v313
      %vm331 = vweird.f32 %v324
      %vm332 = vmor %vm330, %vm331
      %v333 = vsel %vm332, %v324, %v329
      %v334 = vmul.f32 %v300, %v323
      %v335 = vmul.f32 %v301, %v333
      %v337 = vperm.slane %v282, 0
      %v339 = vmul.f32 %v334, %v337
      %v340 = vmul.f32 %v335, %v337
      %v342 = vperm.slane %v283, 0
      %v344 = vadd.f32 %v339, %v342
      %v345 = vadd.f32 %v340, %v342
      %v346 = vpack.c.bf16 %v345, %v344
      %v347 = vld [vmem:[%s266] sm:$0xf]
      %v348 = vld [vmem:[%s266 + $0x4] sm:$0xf]
      %v349 = vld [vmem:[%s266 + $0x8] sm:$0xf]
      %v350 = vld [vmem:[%s266 + $0xc] sm:$0xf]
      %v351 = vld [vmem:[%s269] sm:$0x1]
      %v353 = vperm.slane %v351, 0
      %v359 = vunpack.c.l.b16 %v347
      %v360 = vunpack.c.l.b16 %v348
      %v361 = vunpack.c.l.b16 %v349
      %v362 = vunpack.c.l.b16 %v350
      %v363 = vpack.c.b16 %v360, %v359
      %v364 = vpack.c.b16 %v362, %v361
      %v368 = vsel %vm284, %v346, 0
      %370 = vmatpush.bf16.msra.mxu0 0
      %371 = vmatpush.bf16.msra.mxu0 0
      %372 = vmatpush.bf16.msra.mxu0 0
      %373 = vmatpush.bf16.msra.mxu0 0
      %374 = vmatpush.bf16.msra.mxu0 0
      %375 = vmatpush.bf16.msra.mxu0 0
      %376 = vmatpush.bf16.msra.mxu0 %v364
      %377 = vmatpush.bf16.msra.mxu0 %v363
      %378 = vmatmul.bf16.gmra.mxu0 %v368
      %v379 = vpop.f32.mrf.mxu0
      %v380 = vadd.f32 %v353, %v379
      %v381 = vpop.f32.mrf.mxu0
      %v382 = vadd.f32 %v353, %v381
      %383 = vdwg.mxu0
      %384 = vst [vmem:[%s277] sm:$0xff] %v380
      %385 = vst [vmem:[%s277 + $0x8] sm:$0xff] %v382
      %s386 = smul.u32 2, %s20
      %p387 = scmp.lt.s32.totalorder %s386, 3
      %s388 = scalar_select %p387, %s386, 3
      %p389 = scmp.lt.s32.totalorder %s21, 0
      %s390 = scalar_select %p389, %s21, 0
      %s391 = sadd.s32 %s390, %s388
      %s392 = smul.addr %s391, 8
      %s393 = scalar_lea.vmem %s5, %s392
      // Predicated region
      $region41: #{_lambda_.3} parent=39 // pred_check
        %p394 = pneg %p168
      $region42: #{_lambda_.3} parent=39 // pred_check_branch
        %396 = sbr.rel (%p394) target = $region44
      $region43: #{_lambda_.3} parent=39 // pred_region
        %s397 = smul.u32 2, %s20
      $region44: #{_lambda_.3} parent=39 // pred_fallthru
        _
    $region40: #{_lambda_.3} parent=5 // pred_fallthru
      _
    %p398 = scmp.le.s32.totalorder 2, %s11
    // Predicated region
    $region45: #{_lambda_.3} parent=5 // pred_check
      %p399 = pneg %p398
    $region46: #{_lambda_.3} parent=5 // pred_check_branch
      %401 = sbr.rel (%p399) target = $region48
    $region47: #{_lambda_.3} parent=5 // pred_region
      %s402 = ssub.s32 %s11, 2
      // Predicated region
      $region49: #{_lambda_.3} parent=47 // pred_check
        %p403 = pneg %p174
      $region50: #{_lambda_.3} parent=47 // pred_check_branch
        %405 = sbr.rel (%p403) target = $region52
      $region51: #{_lambda_.3} parent=47 // pred_region
        %s406 = smul.u32 2, %s22
        %p407 = scmp.lt.s32.totalorder %s406, 3
        %s408 = scalar_select %p407, %s406, 3
        %p409 = scmp.lt.s32.totalorder %s23, 0
        %s410 = scalar_select %p409, %s23, 0
        %s411 = sadd.s32 %s410, %s408
        %s412 = smul.addr %s411, 8
        %s413 = scalar_lea.vmem %s5, %s412
      $region52: #{_lambda_.3} parent=47 // pred_fallthru
        _
    $region48: #{_lambda_.3} parent=5 // pred_fallthru
      _
  $region6: #{_lambda_.3} parent=0 // loop_footer
    %s15 = sadd.s32 1, %s11
  $region7: #{_lambda_.3} parent=0 // loop_footer_branch
    %10 = sbr.rel target = $region3
  $region8: #{_lambda_.3} parent=0 // loop_exit
    _

// kernel: _lambda_.2
$region0: #{_lambda_.2}
  #allocation0 [shape = 'u32[]', space=smem, size = 0x4, offset = 0x4, fixed_abs, tag = 'smem constant byte address 0x4 - core index']
  #allocation1 [shape = 'u32[72,128]{1,0:T(1,128)}', space=vmem, size = 0x9000, scoped, tag = 'internal scratch']
  #allocation2 [shape = 'f32[16,32]{1,0:T(8,128)}', space=vmem, size = 0x2000, scoped, tag = 'scratch operand']
  %s0 = inlined_call_operand.vmem [shape: f32[32,32], index: 0, kind: input, shape index: {}]
  %s1 = inlined_call_operand.vmem [shape: f32[16,16], index: 1, kind: input, shape index: {}]
  %s2 = inlined_call_operand.vmem [shape: f32[2,1,32], index: 2, kind: input, shape index: {}]
  %s3 = inlined_call_operand.vmem [shape: f32[2,1,32], index: 3, kind: input, shape index: {}]
  %s4 = inlined_call_operand.vmem [shape: bf16[2,12,32,8], index: 4, kind: input, shape index: {}]
  %s5 = inlined_call_operand.vmem [shape: bf16[2,4,8,32], index: 5, kind: input, shape index: {}]
  %s6 = inlined_call_operand.vmem [shape: f32[2,1,32], index: 6, kind: input, shape index: {}]
  %s7 = inlined_call_operand.vmem [shape: f32[2,1,32], index: 7, kind: input, shape index: {}]
  %s8 = inlined_call_operand.vmem [shape: f32[2,1,32], index: 8, kind: input, shape index: {}]
  %s9 = inlined_call_operand.vmem [shape: bf16[2,32,128], index: 9, kind: input, shape index: {}]
  %s10 = inlined_call_operand.vmem [shape: f32[2,1,128], index: 10, kind: input, shape index: {}]
  %s11 = inlined_call_operand.vmem [shape: bf16[2,128,32], index: 11, kind: input, shape index: {}]
  %s12 = inlined_call_operand.vmem [shape: f32[2,1,32], index: 12, kind: input, shape index: {}]
  %s13 = inlined_call_operand.vmem [shape: f32[32,32], index: 13, kind: output, shape index: {}]
  %s14 = sld [smem:[#allocation0]]
  $region93: #{_lambda_.2} parent=0
    _
  %s16 = ssub.s32 1, %s14
  %s17 = scalar_select 0, %s16, %s14
  loop: start=0, step=1, limit=6
  $region2: #{_lambda_.2} parent=0 // loop_pre_header
    _
  $region3: #{_lambda_.2} parent=0 // loop_header
    %s19 = sphi 0, %s23
    %p20 = scmp.ge.s32.totalorder %s19, 6
    %s26 = sphi 0, %s38
    %s27 = sphi 0, %s34
    %s28 = sphi 0, %s26
    %s29 = sphi 0, %s27
    %s30 = sphi 0, %s28
    %s31 = sphi 0, %s29
    %s41 = sphi 0, %s43
    %s44 = sphi 0, %s41
    %s45 = sphi 0, %s44
    %s61 = sphi 0, %s45
    %s65 = sphi 0, %s65
    %s67 = sphi 0, %s65
    %s68 = sphi 0, %s67
    %s82 = sphi 0, %s68
    %s88 = sphi 0, %s90
    %s91 = sphi 0, %s88
    %s92 = sphi 0, %s91
    %s108 = sphi 0, %s92
    %s114 = sphi 0, %s116
    %s117 = sphi 0, %s114
    %s118 = sphi 0, %s117
    %s134 = sphi 0, %s118
    %s140 = sphi 0, %s142
    %s143 = sphi 0, %s140
    %s144 = sphi 0, %s143
    %s160 = sphi 0, %s144
    %s166 = sphi 0, %s168
    %s169 = sphi 0, %s166
    %s170 = sphi 0, %s169
    %s186 = sphi 0, %s170
    %s192 = sphi 0, %s194
    %s195 = sphi 0, %s192
    %s196 = sphi 0, %s195
    %s212 = sphi 0, %s196
    %s218 = sphi 0, %s220
    %s221 = sphi 0, %s218
    %s222 = sphi 0, %s221
    %s238 = sphi 0, %s222
    %s244 = sphi 0, %s246
    %s247 = sphi 0, %s244
    %s248 = sphi 0, %s247
    %s264 = sphi 0, %s248
    %s270 = sphi 0, %s272
    %s273 = sphi 0, %s270
    %s274 = sphi 0, %s273
    %s290 = sphi 0, %s274
    %s296 = sphi 0, %s298
    %s299 = sphi 0, %s296
    %s300 = sphi 0, %s299
    %s316 = sphi 0, %s300
    %s322 = sphi 0, %s324
    %s325 = sphi 0, %s322
    %s326 = sphi 0, %s325
    %s342 = sphi 0, %s326
    %s348 = sphi 0, %s350
    %s351 = sphi 0, %s348
    %s352 = sphi 0, %s351
    %s368 = sphi 0, %s352
    %s374 = sphi 0, %s376
    %s377 = sphi 0, %s374
    %s378 = sphi 0, %s377
    %s394 = sphi 0, %s378
  $region4: #{_lambda_.2} parent=0 // loop_header_branch
    %22 = sbr.rel (%p20) target = $region8
  $region5: #{_lambda_.2} parent=0 // loop_body
    %s24 = ssub.s32 %s19, 1
    %s25 = ssub.s32 %s19, 2
    %s32 = sadd.s32 1, %s27
    %p33 = scmp.ge.s32.totalorder %s32, 2
    %s34 = scalar_select %p33, 0, %s32
    %s35 = sadd.s32 1, %s26
    %s36 = scalar_select %p33, %s35, %s26
    %p37 = scmp.ge.s32.totalorder %s36, 2
    %s38 = scalar_select %p37, 0, %s36
    %s39 = ssub.s32 %s26, %s38
    %p40 = scmp.eq.s32.totalorder %s39, 0
    %s42 = sadd.s32 %s41, 1
    %s43 = scalar_select %p40, %s41, %s42
    %p46 = pneg %p40
    %p47 = scmp.eq.s32.totalorder %s19, 3
    %p48 = por %p46, %p47
    %p49 = scmp.ne.s32.totalorder %s41, %s44
    %p50 = scmp.eq.s32.totalorder %s19, 0
    %p51 = por %p49, %p50
    %p52 = scmp.ne.s32.totalorder %s41, %s44
    %p53 = scmp.eq.s32.totalorder %s24, 3
    %p54 = por %p52, %p53
    %p55 = scmp.ne.s32.totalorder %s44, %s45
    %p56 = scmp.eq.s32.totalorder %s24, 0
    %p57 = por %p55, %p56
    %p58 = scmp.ne.s32.totalorder %s44, %s45
    %p59 = scmp.eq.s32.totalorder %s25, 3
    %p60 = por %p58, %p59
    %p62 = scmp.ne.s32.totalorder %s45, %s61
    %p63 = scmp.eq.s32.totalorder %s25, 0
    %p64 = por %p62, %p63
    %s66 = sadd.s32 %s65, 1
    %p69 = scmp.eq.s32.totalorder %s19, 3
    %p70 = scmp.ne.s32.totalorder %s65, %s67
    %p71 = scmp.eq.s32.totalorder %s19, 0
    %p72 = por %p70, %p71
    %p73 = scmp.ne.s32.totalorder %s65, %s67
    %p74 = scmp.eq.s32.totalorder %s24, 3
    %p75 = por %p73, %p74
    %p76 = scmp.ne.s32.totalorder %s67, %s68
    %p77 = scmp.eq.s32.totalorder %s24, 0
    %p78 = por %p76, %p77
    %p79 = scmp.ne.s32.totalorder %s67, %s68
    %p80 = scmp.eq.s32.totalorder %s25, 3
    %p81 = por %p79, %p80
    %p83 = scmp.ne.s32.totalorder %s68, %s82
    %p84 = scmp.eq.s32.totalorder %s25, 0
    %p85 = por %p83, %p84
    %s86 = ssub.s32 %s27, %s34
    %p87 = scmp.eq.s32.totalorder %s86, 0
    %s89 = sadd.s32 %s88, 1
    %s90 = scalar_select %p87, %s88, %s89
    %p93 = pneg %p87
    %p94 = scmp.eq.s32.totalorder %s19, 3
    %p95 = por %p93, %p94
    %p96 = scmp.ne.s32.totalorder %s88, %s91
    %p97 = scmp.eq.s32.totalorder %s19, 0
    %p98 = por %p96, %p97
    %p99 = scmp.ne.s32.totalorder %s88, %s91
    %p100 = scmp.eq.s32.totalorder %s24, 3
    %p101 = por %p99, %p100
    %p102 = scmp.ne.s32.totalorder %s91, %s92
    %p103 = scmp.eq.s32.totalorder %s24, 0
    %p104 = por %p102, %p103
    %p105 = scmp.ne.s32.totalorder %s91, %s92
    %p106 = scmp.eq.s32.totalorder %s25, 3
    %p107 = por %p105, %p106
    %p109 = scmp.ne.s32.totalorder %s92, %s108
    %p110 = scmp.eq.s32.totalorder %s25, 0
    %p111 = por %p109, %p110
    %s112 = ssub.s32 %s27, %s34
    %p113 = scmp.eq.s32.totalorder %s112, 0
    %s115 = sadd.s32 %s114, 1
    %s116 = scalar_select %p113, %s114, %s115
    %p119 = pneg %p113
    %p120 = scmp.eq.s32.totalorder %s19, 3
    %p121 = por %p119, %p120
    %p122 = scmp.ne.s32.totalorder %s114, %s117
    %p123 = scmp.eq.s32.totalorder %s19, 0
    %p124 = por %p122, %p123
    %p125 = scmp.ne.s32.totalorder %s114, %s117
    %p126 = scmp.eq.s32.totalorder %s24, 3
    %p127 = por %p125, %p126
    %p128 = scmp.ne.s32.totalorder %s117, %s118
    %p129 = scmp.eq.s32.totalorder %s24, 0
    %p130 = por %p128, %p129
    %p131 = scmp.ne.s32.totalorder %s117, %s118
    %p132 = scmp.eq.s32.totalorder %s25, 3
    %p133 = por %p131, %p132
    %p135 = scmp.ne.s32.totalorder %s118, %s134
    %p136 = scmp.eq.s32.totalorder %s25, 0
    %p137 = por %p135, %p136
    %s138 = ssub.s32 %s27, %s34
    %p139 = scmp.eq.s32.totalorder %s138, 0
    %s141 = sadd.s32 %s140, 1
    %s142 = scalar_select %p139, %s140, %s141
    %p145 = pneg %p139
    %p146 = scmp.eq.s32.totalorder %s19, 3
    %p147 = por %p145, %p146
    %p148 = scmp.ne.s32.totalorder %s140, %s143
    %p149 = scmp.eq.s32.totalorder %s19, 0
    %p150 = por %p148, %p149
    %p151 = scmp.ne.s32.totalorder %s140, %s143
    %p152 = scmp.eq.s32.totalorder %s24, 3
    %p153 = por %p151, %p152
    %p154 = scmp.ne.s32.totalorder %s143, %s144
    %p155 = scmp.eq.s32.totalorder %s24, 0
    %p156 = por %p154, %p155
    %p157 = scmp.ne.s32.totalorder %s143, %s144
    %p158 = scmp.eq.s32.totalorder %s25, 3
    %p159 = por %p157, %p158
    %p161 = scmp.ne.s32.totalorder %s144, %s160
    %p162 = scmp.eq.s32.totalorder %s25, 0
    %p163 = por %p161, %p162
    %s164 = ssub.s32 %s27, %s34
    %p165 = scmp.eq.s32.totalorder %s164, 0
    %s167 = sadd.s32 %s166, 1
    %s168 = scalar_select %p165, %s166, %s167
    %p171 = pneg %p165
    %p172 = scmp.eq.s32.totalorder %s19, 3
    %p173 = por %p171, %p172
    %p174 = scmp.ne.s32.totalorder %s166, %s169
    %p175 = scmp.eq.s32.totalorder %s19, 0
    %p176 = por %p174, %p175
    %p177 = scmp.ne.s32.totalorder %s166, %s169
    %p178 = scmp.eq.s32.totalorder %s24, 3
    %p179 = por %p177, %p178
    %p180 = scmp.ne.s32.totalorder %s169, %s170
    %p181 = scmp.eq.s32.totalorder %s24, 0
    %p182 = por %p180, %p181
    %p183 = scmp.ne.s32.totalorder %s169, %s170
    %p184 = scmp.eq.s32.totalorder %s25, 3
    %p185 = por %p183, %p184
    %p187 = scmp.ne.s32.totalorder %s170, %s186
    %p188 = scmp.eq.s32.totalorder %s25, 0
    %p189 = por %p187, %p188
    %s190 = ssub.s32 %s27, %s34
    %p191 = scmp.eq.s32.totalorder %s190, 0
    %s193 = sadd.s32 %s192, 1
    %s194 = scalar_select %p191, %s192, %s193
    %p197 = pneg %p191
    %p198 = scmp.eq.s32.totalorder %s19, 3
    %p199 = por %p197, %p198
    %p200 = scmp.ne.s32.totalorder %s192, %s195
    %p201 = scmp.eq.s32.totalorder %s19, 0
    %p202 = por %p200, %p201
    %p203 = scmp.ne.s32.totalorder %s192, %s195
    %p204 = scmp.eq.s32.totalorder %s24, 3
    %p205 = por %p203, %p204
    %p206 = scmp.ne.s32.totalorder %s195, %s196
    %p207 = scmp.eq.s32.totalorder %s24, 0
    %p208 = por %p206, %p207
    %p209 = scmp.ne.s32.totalorder %s195, %s196
    %p210 = scmp.eq.s32.totalorder %s25, 3
    %p211 = por %p209, %p210
    %p213 = scmp.ne.s32.totalorder %s196, %s212
    %p214 = scmp.eq.s32.totalorder %s25, 0
    %p215 = por %p213, %p214
    %s216 = ssub.s32 %s27, %s34
    %p217 = scmp.eq.s32.totalorder %s216, 0
    %s219 = sadd.s32 %s218, 1
    %s220 = scalar_select %p217, %s218, %s219
    %p223 = pneg %p217
    %p224 = scmp.eq.s32.totalorder %s19, 3
    %p225 = por %p223, %p224
    %p226 = scmp.ne.s32.totalorder %s218, %s221
    %p227 = scmp.eq.s32.totalorder %s19, 0
    %p228 = por %p226, %p227
    %p229 = scmp.ne.s32.totalorder %s218, %s221
    %p230 = scmp.eq.s32.totalorder %s24, 3
    %p231 = por %p229, %p230
    %p232 = scmp.ne.s32.totalorder %s221, %s222
    %p233 = scmp.eq.s32.totalorder %s24, 0
    %p234 = por %p232, %p233
    %p235 = scmp.ne.s32.totalorder %s221, %s222
    %p236 = scmp.eq.s32.totalorder %s25, 3
    %p237 = por %p235, %p236
    %p239 = scmp.ne.s32.totalorder %s222, %s238
    %p240 = scmp.eq.s32.totalorder %s25, 0
    %p241 = por %p239, %p240
    %s242 = ssub.s32 %s27, %s34
    %p243 = scmp.eq.s32.totalorder %s242, 0
    %s245 = sadd.s32 %s244, 1
    %s246 = scalar_select %p243, %s244, %s245
    %p249 = pneg %p243
    %p250 = scmp.eq.s32.totalorder %s19, 3
    %p251 = por %p249, %p250
    %p252 = scmp.ne.s32.totalorder %s244, %s247
    %p253 = scmp.eq.s32.totalorder %s19, 0
    %p254 = por %p252, %p253
    %p255 = scmp.ne.s32.totalorder %s244, %s247
    %p256 = scmp.eq.s32.totalorder %s24, 3
    %p257 = por %p255, %p256
    %p258 = scmp.ne.s32.totalorder %s247, %s248
    %p259 = scmp.eq.s32.totalorder %s24, 0
    %p260 = por %p258, %p259
    %p261 = scmp.ne.s32.totalorder %s247, %s248
    %p262 = scmp.eq.s32.totalorder %s25, 3
    %p263 = por %p261, %p262
    %p265 = scmp.ne.s32.totalorder %s248, %s264
    %p266 = scmp.eq.s32.totalorder %s25, 0
    %p267 = por %p265, %p266
    %s268 = ssub.s32 %s27, %s34
    %p269 = scmp.eq.s32.totalorder %s268, 0
    %s271 = sadd.s32 %s270, 1
    %s272 = scalar_select %p269, %s270, %s271
    %p275 = pneg %p269
    %p276 = scmp.eq.s32.totalorder %s19, 3
    %p277 = por %p275, %p276
    %p278 = scmp.ne.s32.totalorder %s270, %s273
    %p279 = scmp.eq.s32.totalorder %s19, 0
    %p280 = por %p278, %p279
    %p281 = scmp.ne.s32.totalorder %s270, %s273
    %p282 = scmp.eq.s32.totalorder %s24, 3
    %p283 = por %p281, %p282
    %p284 = scmp.ne.s32.totalorder %s273, %s274
    %p285 = scmp.eq.s32.totalorder %s24, 0
    %p286 = por %p284, %p285
    %p287 = scmp.ne.s32.totalorder %s273, %s274
    %p288 = scmp.eq.s32.totalorder %s25, 3
    %p289 = por %p287, %p288
    %p291 = scmp.ne.s32.totalorder %s274, %s290
    %p292 = scmp.eq.s32.totalorder %s25, 0
    %p293 = por %p291, %p292
    %s294 = ssub.s32 %s27, %s34
    %p295 = scmp.eq.s32.totalorder %s294, 0
    %s297 = sadd.s32 %s296, 1
    %s298 = scalar_select %p295, %s296, %s297
    %p301 = pneg %p295
    %p302 = scmp.eq.s32.totalorder %s19, 3
    %p303 = por %p301, %p302
    %p304 = scmp.ne.s32.totalorder %s296, %s299
    %p305 = scmp.eq.s32.totalorder %s19, 0
    %p306 = por %p304, %p305
    %p307 = scmp.ne.s32.totalorder %s296, %s299
    %p308 = scmp.eq.s32.totalorder %s24, 3
    %p309 = por %p307, %p308
    %p310 = scmp.ne.s32.totalorder %s299, %s300
    %p311 = scmp.eq.s32.totalorder %s24, 0
    %p312 = por %p310, %p311
    %p313 = scmp.ne.s32.totalorder %s299, %s300
    %p314 = scmp.eq.s32.totalorder %s25, 3
    %p315 = por %p313, %p314
    %p317 = scmp.ne.s32.totalorder %s300, %s316
    %p318 = scmp.eq.s32.totalorder %s25, 0
    %p319 = por %p317, %p318
    %s320 = ssub.s32 %s27, %s34
    %p321 = scmp.eq.s32.totalorder %s320, 0
    %s323 = sadd.s32 %s322, 1
    %s324 = scalar_select %p321, %s322, %s323
    %p327 = pneg %p321
    %p328 = scmp.eq.s32.totalorder %s19, 3
    %p329 = por %p327, %p328
    %p330 = scmp.ne.s32.totalorder %s322, %s325
    %p331 = scmp.eq.s32.totalorder %s19, 0
    %p332 = por %p330, %p331
    %p333 = scmp.ne.s32.totalorder %s322, %s325
    %p334 = scmp.eq.s32.totalorder %s24, 3
    %p335 = por %p333, %p334
    %p336 = scmp.ne.s32.totalorder %s325, %s326
    %p337 = scmp.eq.s32.totalorder %s24, 0
    %p338 = por %p336, %p337
    %p339 = scmp.ne.s32.totalorder %s325, %s326
    %p340 = scmp.eq.s32.totalorder %s25, 3
    %p341 = por %p339, %p340
    %p343 = scmp.ne.s32.totalorder %s326, %s342
    %p344 = scmp.eq.s32.totalorder %s25, 0
    %p345 = por %p343, %p344
    %s346 = ssub.s32 %s27, %s34
    %p347 = scmp.eq.s32.totalorder %s346, 0
    %s349 = sadd.s32 %s348, 1
    %s350 = scalar_select %p347, %s348, %s349
    %p353 = pneg %p347
    %p354 = scmp.eq.s32.totalorder %s19, 3
    %p355 = por %p353, %p354
    %p356 = scmp.ne.s32.totalorder %s348, %s351
    %p357 = scmp.eq.s32.totalorder %s19, 0
    %p358 = por %p356, %p357
    %p359 = scmp.ne.s32.totalorder %s348, %s351
    %p360 = scmp.eq.s32.totalorder %s24, 3
    %p361 = por %p359, %p360
    %p362 = scmp.ne.s32.totalorder %s351, %s352
    %p363 = scmp.eq.s32.totalorder %s24, 0
    %p364 = por %p362, %p363
    %p365 = scmp.ne.s32.totalorder %s351, %s352
    %p366 = scmp.eq.s32.totalorder %s25, 3
    %p367 = por %p365, %p366
    %p369 = scmp.ne.s32.totalorder %s352, %s368
    %p370 = scmp.eq.s32.totalorder %s25, 0
    %p371 = por %p369, %p370
    %s372 = ssub.s32 %s26, %s38
    %p373 = scmp.eq.s32.totalorder %s372, 0
    %s375 = sadd.s32 %s374, 1
    %s376 = scalar_select %p373, %s374, %s375
    %p379 = pneg %p373
    %p380 = scmp.eq.s32.totalorder %s19, 3
    %p381 = por %p379, %p380
    %p382 = scmp.ne.s32.totalorder %s374, %s377
    %p383 = scmp.eq.s32.totalorder %s19, 0
    %p384 = por %p382, %p383
    %p385 = scmp.ne.s32.totalorder %s374, %s377
    %p386 = scmp.eq.s32.totalorder %s24, 3
    %p387 = por %p385, %p386
    %p388 = scmp.ne.s32.totalorder %s377, %s378
    %p389 = scmp.eq.s32.totalorder %s24, 0
    %p390 = por %p388, %p389
    %p391 = scmp.ne.s32.totalorder %s377, %s378
    %p392 = scmp.eq.s32.totalorder %s25, 3
    %p393 = por %p391, %p392
    %p395 = scmp.ne.s32.totalorder %s378, %s394
    %p396 = scmp.eq.s32.totalorder %s25, 0
    %p397 = por %p395, %p396
    %p398 = scmp.le.s32.totalorder 1, %s19
    %p399 = scmp.lt.s32.totalorder %s19, 5
    %p400 = pnand %p398, %p399
    %p401 = pneg %p400
    // Predicated region
    $region9: #{_lambda_.2} parent=5 // pred_check
      _
    $region10: #{_lambda_.2} parent=5 // pred_check_branch
      %403 = sbr.rel (%p400) target = $region12
    $region11: #{_lambda_.2} parent=5 // pred_region
      %s404 = ssub.s32 %s19, 1
      // Predicated region
      $region13: #{_lambda_.2} parent=11 // pred_check
        %p405 = pneg %p78
      $region14: #{_lambda_.2} parent=11 // pred_check_branch
        %407 = sbr.rel (%p405) target = $region16
      $region15: #{_lambda_.2} parent=11 // pred_region
        _
      $region16: #{_lambda_.2} parent=11 // pred_fallthru
        _
    $region12: #{_lambda_.2} parent=5 // pred_fallthru
      _
    %p408 = scmp.lt.s32.totalorder %s19, 4
    // Predicated region
    $region17: #{_lambda_.2} parent=5 // pred_check
      %p409 = pneg %p408
    $region18: #{_lambda_.2} parent=5 // pred_check_branch
      %411 = sbr.rel (%p409) target = $region20
    $region19: #{_lambda_.2} parent=5 // pred_region
      // Predicated region
      $region21: #{_lambda_.2} parent=19 // pred_check
        %p412 = pneg %p51
      $region22: #{_lambda_.2} parent=19 // pred_check_branch
        %414 = sbr.rel (%p412) target = $region24
      $region23: #{_lambda_.2} parent=19 // pred_region
        %s415 = smul.u32 2, %s26
        %p416 = scmp.lt.s32.totalorder %s415, 3
        %s417 = scalar_select %p416, %s415, 3
        %s418 = smul.addr %s417, 8
        %s419 = scalar_lea.vmem %s0, %s418
        %s420 = smul.u32 2, %s26
      $region24: #{_lambda_.2} parent=19 // pred_fallthru
        _
      // Predicated region
      $region25: #{_lambda_.2} parent=19 // pred_check
        %p421 = pneg %p98
      $region26: #{_lambda_.2} parent=19 // pred_check_branch
        %423 = sbr.rel (%p421) target = $region28
      $region27: #{_lambda_.2} parent=19 // pred_region
        %p424 = scmp.lt.s32.totalorder %s27, 1
        %s425 = scalar_select %p424, %s27, 1
        %s426 = scalar_lea.vmem %s2, %s425
      $region28: #{_lambda_.2} parent=19 // pred_fallthru
        _
      // Predicated region
      $region29: #{_lambda_.2} parent=19 // pred_check
        %p427 = pneg %p124
      $region30: #{_lambda_.2} parent=19 // pred_check_branch
        %429 = sbr.rel (%p427) target = $region32
      $region31: #{_lambda_.2} parent=19 // pred_region
        %p430 = scmp.lt.s32.totalorder %s27, 1
        %s431 = scalar_select %p430, %s27, 1
        %s432 = scalar_lea.vmem %s3, %s431
      $region32: #{_lambda_.2} parent=19 // pred_fallthru
        _
      // Predicated region
      $region33: #{_lambda_.2} parent=19 // pred_check
        %p433 = pneg %p150
      $region34: #{_lambda_.2} parent=19 // pred_check_branch
        %435 = sbr.rel (%p433) target = $region36
      $region35: #{_lambda_.2} parent=19 // pred_region
        %p436 = scmp.lt.s32.totalorder %s27, 1
        %s437 = scalar_select %p436, %s27, 1
        %s438 = smul.addr %s437, 48
        %s439 = smul.addr %s438, 4
        %s440 = scalar_lea.vmem %s4, %s439
      $region36: #{_lambda_.2} parent=19 // pred_fallthru
        _
      // Predicated region
      $region37: #{_lambda_.2} parent=19 // pred_check
        %p441 = pneg %p176
      $region38: #{_lambda_.2} parent=19 // pred_check_branch
        %443 = sbr.rel (%p441) target = $region40
      $region39: #{_lambda_.2} parent=19 // pred_region
        %p444 = scmp.lt.s32.totalorder %s27, 1
        %s445 = scalar_select %p444, %s27, 1
        %s446 = smul.addr %s445, 4
        %s447 = smul.addr %s446, 4
        %s448 = scalar_lea.vmem %s5, %s447
      $region40: #{_lambda_.2} parent=19 // pred_fallthru
        _
      // Predicated region
      $region41: #{_lambda_.2} parent=19 // pred_check
        %p449 = pneg %p202
      $region42: #{_lambda_.2} parent=19 // pred_check_branch
        %451 = sbr.rel (%p449) target = $region44
      $region43: #{_lambda_.2} parent=19 // pred_region
        %p452 = scmp.lt.s32.totalorder %s27, 1
        %s453 = scalar_select %p452, %s27, 1
        %s454 = scalar_lea.vmem %s6, %s453
      $region44: #{_lambda_.2} parent=19 // pred_fallthru
        _
      // Predicated region
      $region45: #{_lambda_.2} parent=19 // pred_check
        %p455 = pneg %p228
      $region46: #{_lambda_.2} parent=19 // pred_check_branch
        %457 = sbr.rel (%p455) target = $region48
      $region47: #{_lambda_.2} parent=19 // pred_region
        %p458 = scmp.lt.s32.totalorder %s27, 1
        %s459 = scalar_select %p458, %s27, 1
        %s460 = scalar_lea.vmem %s7, %s459
      $region48: #{_lambda_.2} parent=19 // pred_fallthru
        _
      // Predicated region
      $region49: #{_lambda_.2} parent=19 // pred_check
        %p461 = pneg %p254
      $region50: #{_lambda_.2} parent=19 // pred_check_branch
        %463 = sbr.rel (%p461) target = $region52
      $region51: #{_lambda_.2} parent=19 // pred_region
        %p464 = scmp.lt.s32.totalorder %s27, 1
        %s465 = scalar_select %p464, %s27, 1
        %s466 = scalar_lea.vmem %s8, %s465
      $region52: #{_lambda_.2} parent=19 // pred_fallthru
        _
      // Predicated region
      $region53: #{_lambda_.2} parent=19 // pred_check
        %p467 = pneg %p280
      $region54: #{_lambda_.2} parent=19 // pred_check_branch
        %469 = sbr.rel (%p467) target = $region56
      $region55: #{_lambda_.2} parent=19 // pred_region
        %p470 = scmp.lt.s32.totalorder %s27, 1
        %s471 = scalar_select %p470, %s27, 1
        %s472 = smul.addr %s471, 4
        %s473 = smul.addr %s472, 4
        %s474 = scalar_lea.vmem %s9, %s473
      $region56: #{_lambda_.2} parent=19 // pred_fallthru
        _
      // Predicated region
      $region57: #{_lambda_.2} parent=19 // pred_check
        %p475 = pneg %p306
      $region58: #{_lambda_.2} parent=19 // pred_check_branch
        %477 = sbr.rel (%p475) target = $region60
      $region59: #{_lambda_.2} parent=19 // pred_region
        %p478 = scmp.lt.s32.totalorder %s27, 1
        %s479 = scalar_select %p478, %s27, 1
        %s480 = scalar_lea.vmem %s10, %s479
      $region60: #{_lambda_.2} parent=19 // pred_fallthru
        _
      // Predicated region
      $region61: #{_lambda_.2} parent=19 // pred_check
        %p481 = pneg %p332
      $region62: #{_lambda_.2} parent=19 // pred_check_branch
        %483 = sbr.rel (%p481) target = $region64
      $region63: #{_lambda_.2} parent=19 // pred_region
        %p484 = scmp.lt.s32.totalorder %s27, 1
        %s485 = scalar_select %p484, %s27, 1
        %s486 = smul.addr %s485, 16
        %s487 = smul.addr %s486, 4
        %s488 = scalar_lea.vmem %s11, %s487
      $region64: #{_lambda_.2} parent=19 // pred_fallthru
        _
      // Predicated region
      $region65: #{_lambda_.2} parent=19 // pred_check
        %p489 = pneg %p358
      $region66: #{_lambda_.2} parent=19 // pred_check_branch
        %491 = sbr.rel (%p489) target = $region68
      $region67: #{_lambda_.2} parent=19 // pred_region
        %p492 = scmp.lt.s32.totalorder %s27, 1
        %s493 = scalar_select %p492, %s27, 1
        %s494 = scalar_lea.vmem %s12, %s493
      $region68: #{_lambda_.2} parent=19 // pred_fallthru
        _
    $region20: #{_lambda_.2} parent=5 // pred_fallthru
      _
    %p495 = scmp.le.s32.totalorder 1, %s19
    %p496 = scmp.lt.s32.totalorder %s19, 5
    %p497 = pnand %p495, %p496
    %p498 = pneg %p497
    // Predicated region
    $region69: #{_lambda_.2} parent=5 // pred_check
      _
    $region70: #{_lambda_.2} parent=5 // pred_check_branch
      %500 = sbr.rel (%p497) target = $region72
    $region71: #{_lambda_.2} parent=5 // pred_region
      %s501 = ssub.s32 %s19, 1
      %s502 = smul.u32 2, %s28
      %p503 = scmp.lt.s32.totalorder %s502, 3
      %s504 = scalar_select %p503, %s502, 3
      %s505 = smul.addr %s504, 8
      %s506 = scalar_lea.vmem %s0, %s505
      %p507 = pneg %p57
      %p508 = pneg %p54
      %p509 = pneg %p78
      %p510 = pneg %p75
      %p511 = scmp.lt.s32.totalorder %s29, 1
      %s512 = scalar_select %p511, %s29, 1
      %s513 = scalar_lea.vmem %s2, %s512
      %p514 = pneg %p104
      %p515 = pneg %p101
      %p516 = scmp.lt.s32.totalorder %s29, 1
      %s517 = scalar_select %p516, %s29, 1
      %s518 = scalar_lea.vmem %s3, %s517
      %p519 = pneg %p130
      %p520 = pneg %p127
      %p521 = scmp.lt.s32.totalorder %s29, 1
      %s522 = scalar_select %p521, %s29, 1
      %s523 = smul.addr %s522, 48
      %s524 = smul.addr %s523, 4
      %s525 = scalar_lea.vmem %s4, %s524
      %p526 = pneg %p156
      %p527 = pneg %p153
      %p528 = scmp.lt.s32.totalorder %s29, 1
      %s529 = scalar_select %p528, %s29, 1
      %s530 = smul.addr %s529, 4
      %s531 = smul.addr %s530, 4
      %s532 = scalar_lea.vmem %s5, %s531
      %p533 = pneg %p182
      %p534 = pneg %p179
      %p535 = scmp.lt.s32.totalorder %s29, 1
      %s536 = scalar_select %p535, %s29, 1
      %s537 = scalar_lea.vmem %s6, %s536
      %p538 = pneg %p208
      %p539 = pneg %p205
      %p540 = scmp.lt.s32.totalorder %s29, 1
      %s541 = scalar_select %p540, %s29, 1
      %s542 = scalar_lea.vmem %s7, %s541
      %p543 = pneg %p234
      %p544 = pneg %p231
      %p545 = scmp.lt.s32.totalorder %s29, 1
      %s546 = scalar_select %p545, %s29, 1
      %s547 = scalar_lea.vmem %s8, %s546
      %p548 = pneg %p260
      %p549 = pneg %p257
      %p550 = scmp.lt.s32.totalorder %s29, 1
      %s551 = scalar_select %p550, %s29, 1
      %s552 = smul.addr %s551, 4
      %s553 = smul.addr %s552, 4
      %s554 = scalar_lea.vmem %s9, %s553
      %p555 = pneg %p286
      %p556 = pneg %p283
      %p557 = scmp.lt.s32.totalorder %s29, 1
      %s558 = scalar_select %p557, %s29, 1
      %s559 = scalar_lea.vmem %s10, %s558
      %p560 = pneg %p312
      %p561 = pneg %p309
      %p562 = scmp.lt.s32.totalorder %s29, 1
      %s563 = scalar_select %p562, %s29, 1
      %s564 = smul.addr %s563, 16
      %s565 = smul.addr %s564, 4
      %s566 = scalar_lea.vmem %s11, %s565
      %p567 = pneg %p338
      %p568 = pneg %p335
      %p569 = scmp.lt.s32.totalorder %s29, 1
      %s570 = scalar_select %p569, %s29, 1
      %s571 = scalar_lea.vmem %s12, %s570
      %p572 = pneg %p364
      %p573 = pneg %p361
      %p574 = pneg %p390
      %p575 = pneg %p387
      %s576 = smul.u32 2, %s28
      %p577 = scmp.lt.s32.totalorder %s576, 3
      %s578 = scalar_select %p577, %s576, 3
      %s579 = smul.addr %s578, 8
      %s580 = scalar_lea.vmem %s13, %s579
      %s581 = smul.u32 2, %s28
      %p582 = scmp.lt.s32.totalorder %s581, 3
      %s583 = scalar_select %p582, %s581, 3
      %s584 = smul.addr %s583, 8
      %s585 = scalar_lea.vmem %s0, %s584
      %s586 = smul.u32 2, %s28
      %p587 = scmp.lt.s32.totalorder %s29, 1
      %s588 = scalar_select %p587, %s29, 1
      %s589 = scalar_lea.vmem %s2, %s588
      %p590 = scmp.lt.s32.totalorder %s29, 1
      %s591 = scalar_select %p590, %s29, 1
      %s592 = scalar_lea.vmem %s3, %s591
      %p593 = scmp.lt.s32.totalorder %s29, 1
      %s594 = scalar_select %p593, %s29, 1
      %s595 = smul.addr %s594, 48
      %s596 = smul.addr %s595, 4
      %s597 = scalar_lea.vmem %s4, %s596
      %p598 = scmp.lt.s32.totalorder %s29, 1
      %s599 = scalar_select %p598, %s29, 1
      %s600 = smul.addr %s599, 4
      %s601 = smul.addr %s600, 4
      %s602 = scalar_lea.vmem %s5, %s601
      %p603 = scmp.lt.s32.totalorder %s29, 1
      %s604 = scalar_select %p603, %s29, 1
      %s605 = scalar_lea.vmem %s6, %s604
      %p606 = scmp.lt.s32.totalorder %s29, 1
      %s607 = scalar_select %p606, %s29, 1
      %s608 = scalar_lea.vmem %s7, %s607
      %p609 = scmp.lt.s32.totalorder %s29, 1
      %s610 = scalar_select %p609, %s29, 1
      %s611 = scalar_lea.vmem %s8, %s610
      %p612 = scmp.lt.s32.totalorder %s29, 1
      %s613 = scalar_select %p612, %s29, 1
      %s614 = smul.addr %s613, 4
      %s615 = smul.addr %s614, 4
      %s616 = scalar_lea.vmem %s9, %s615
      %p617 = scmp.lt.s32.totalorder %s29, 1
      %s618 = scalar_select %p617, %s29, 1
      %s619 = scalar_lea.vmem %s10, %s618
      %p620 = scmp.lt.s32.totalorder %s29, 1
      %s621 = scalar_select %p620, %s29, 1
      %s622 = smul.addr %s621, 16
      %s623 = smul.addr %s622, 4
      %s624 = scalar_lea.vmem %s11, %s623
      %p625 = scmp.lt.s32.totalorder %s29, 1
      %s626 = scalar_select %p625, %s29, 1
      %s627 = scalar_lea.vmem %s12, %s626
      %s628 = smul.u32 2, %s28
      %p629 = scmp.lt.s32.totalorder %s628, 3
      %s630 = scalar_select %p629, %s628, 3
      %s631 = smul.addr %s630, 8
      %s632 = scalar_lea.vmem %s13, %s631
      %s633 = smul.u32 2, %s28
      %p635 = scmp.eq.s32.totalorder %s29, 0
      // Predicated region
      $region73: #{_lambda_.2} parent=71 // pred_check
        %p636 = pneg %p635
      $region74: #{_lambda_.2} parent=71 // pred_check_branch
        %638 = sbr.rel (%p636) target = $region76
      $region75: #{_lambda_.2} parent=71 // pred_region
        %v639 = vld [vmem:[%s585] sm:$0xff]
        %v640 = vld [vmem:[%s585 + $0x8] sm:$0xff]
        %vm641 = vcmask 261120
        %642 = vst.msk [vmem:[#allocation2] sm:$0xff] %vm641, %v639
        %643 = vst.msk [vmem:[#allocation2 + $0x8] sm:$0xff] %vm641, %v640
      $region76: #{_lambda_.2} parent=71 // pred_fallthru
        _
      %v644 = vld [vmem:[#allocation2] sm:$0xff]
      %v645 = vld [vmem:[#allocation2 + $0x8] sm:$0xff]
      %v646 = vld [vmem:[%s589] sm:$0x1]
      %v647 = vld [vmem:[%s592] sm:$0x1]
      %vm648 = vcmask 261120
      %v649 = vsel %vm648, %v644, 0.0
      %650 = vadd.xlane.f32.xlu0 %v649
      %v651 = vpop.xlane.xlu0 %650
      %v652 = vsel %vm648, %v645, 0.0
      %653 = vadd.xlane.f32.xlu0 %v652
      %v654 = vpop.xlane.xlu0 %653
      %v655 = vrcp.pop 32.0
      %v656 = vmul.f32 32.0, %v655
      %v657 = vsub.f32 1.0, %v656
      %v658 = vmul.f32 %v655, %v657
      %v659 = vadd.f32 %v655, %v658
      %vm660 = vweird.f32 %v655
      %v661 = vsel %vm660, %v655, %v659
      %v662 = vmul.f32 %v651, %v661
      %v663 = vmul.f32 %v654, %v661
      %v664 = vsub.f32 %v644, %v662
      %v665 = vsub.f32 %v645, %v663
      %v666 = vmul.f32 %v664, %v664
      %v667 = vmul.f32 %v665, %v665
      %v668 = vsel %vm648, %v666, 0.0
      %669 = vadd.xlane.f32.xlu0 %v668
      %v670 = vpop.xlane.xlu0 %669
      %v671 = vsel %vm648, %v667, 0.0
      %672 = vadd.xlane.f32.xlu0 %v671
      %v673 = vpop.xlane.xlu0 %672
      %v674 = vmul.f32 %v670, %v661
      %v675 = vmul.f32 %v673, %v661
      %v676 = vadd.f32 %v674, 1e-05
      %v677 = vadd.f32 %v675, 1e-05
      %v678 = vrsqrt.pop %v676
      %v679 = vmul.f32 %v678, %v676
      %v680 = vmul.f32 %v679, %v678
      %v681 = vmul.f32 0.5, %v680
      %v682 = vsub.f32 1.5, %v681
      %v683 = vmul.f32 %v678, %v682
      %vm684 = vweird.f32 %v676
      %vm685 = vweird.f32 %v678
      %vm686 = vmor %vm684, %vm685
      %v687 = vsel %vm686, %v678, %v683
      %v688 = vrsqrt.pop %v677
      %v689 = vmul.f32 %v688, %v677
      %v690 = vmul.f32 %v689, %v688
      %v691 = vmul.f32 0.5, %v690
      %v692 = vsub.f32 1.5, %v691
      %v693 = vmul.f32 %v688, %v692
      %vm694 = vweird.f32 %v677
      %vm695 = vweird.f32 %v688
      %vm696 = vmor %vm694, %vm695
      %v697 = vsel %vm696, %v688, %v693
      %v698 = vmul.f32 %v664, %v687
      %v699 = vmul.f32 %v665, %v697
      %v701 = vperm.slane %v646, 0
      %v703 = vmul.f32 %v698, %v701
      %v704 = vmul.f32 %v699, %v701
      %v706 = vperm.slane %v647, 0
      %v708 = vadd.f32 %v703, %v706
      %v709 = vadd.f32 %v704, %v706
      %v710 = vpack.c.bf16 %v708, %v708
      %v711 = vpack.c.bf16 %v709, %v709
      %v712 = vld [vmem:[%s597] sm:$0xf]
      %v713 = vld [vmem:[%s597 + $0x4] sm:$0xf]
      %v714 = vld [vmem:[%s597 + $0x8] sm:$0xf]
      %v715 = vld [vmem:[%s597 + $0xc] sm:$0xf]
      %v716 = vld [vmem:[%s597 + $0x10] sm:$0xf]
      %v717 = vld [vmem:[%s597 + $0x14] sm:$0xf]
      %v718 = vld [vmem:[%s597 + $0x18] sm:$0xf]
      %v719 = vld [vmem:[%s597 + $0x1c] sm:$0xf]
      %v720 = vld [vmem:[%s597 + $0x20] sm:$0xf]
      %v721 = vld [vmem:[%s597 + $0x24] sm:$0xf]
      %v722 = vld [vmem:[%s597 + $0x28] sm:$0xf]
      %v723 = vld [vmem:[%s597 + $0x2c] sm:$0xf]
      %v724 = vld [vmem:[%s597 + $0x30] sm:$0xf]
      %v725 = vld [vmem:[%s597 + $0x34] sm:$0xf]
      %v726 = vld [vmem:[%s597 + $0x38] sm:$0xf]
      %v727 = vld [vmem:[%s597 + $0x3c] sm:$0xf]
      %v728 = vld [vmem:[%s597 + $0x40] sm:$0xf]
      %v729 = vld [vmem:[%s597 + $0x44] sm:$0xf]
      %v730 = vld [vmem:[%s597 + $0x48] sm:$0xf]
      %v731 = vld [vmem:[%s597 + $0x4c] sm:$0xf]
      %v732 = vld [vmem:[%s597 + $0x50] sm:$0xf]
      %v733 = vld [vmem:[%s597 + $0x54] sm:$0xf]
      %v734 = vld [vmem:[%s597 + $0x58] sm:$0xf]
      %v735 = vld [vmem:[%s597 + $0x5c] sm:$0xf]
      %v736 = vld [vmem:[%s597 + $0x60] sm:$0xf]
      %v737 = vld [vmem:[%s597 + $0x64] sm:$0xf]
      %v738 = vld [vmem:[%s597 + $0x68] sm:$0xf]
      %v739 = vld [vmem:[%s597 + $0x6c] sm:$0xf]
      %v740 = vld [vmem:[%s597 + $0x70] sm:$0xf]
      %v741 = vld [vmem:[%s597 + $0x74] sm:$0xf]
      %v742 = vld [vmem:[%s597 + $0x78] sm:$0xf]
      %v743 = vld [vmem:[%s597 + $0x7c] sm:$0xf]
      %v744 = vld [vmem:[%s597 + $0x80] sm:$0xf]
      %v745 = vld [vmem:[%s597 + $0x84] sm:$0xf]
      %v746 = vld [vmem:[%s597 + $0x88] sm:$0xf]
      %v747 = vld [vmem:[%s597 + $0x8c] sm:$0xf]
      %v748 = vld [vmem:[%s597 + $0x90] sm:$0xf]
      %v749 = vld [vmem:[%s597 + $0x94] sm:$0xf]
      %v750 = vld [vmem:[%s597 + $0x98] sm:$0xf]
      %v751 = vld [vmem:[%s597 + $0x9c] sm:$0xf]
      %v752 = vld [vmem:[%s597 + $0xa0] sm:$0xf]
      %v753 = vld [vmem:[%s597 + $0xa4] sm:$0xf]
      %v754 = vld [vmem:[%s597 + $0xa8] sm:$0xf]
      %v755 = vld [vmem:[%s597 + $0xac] sm:$0xf]
      %v756 = vld [vmem:[%s597 + $0xb0] sm:$0xf]
      %v757 = vld [vmem:[%s597 + $0xb4] sm:$0xf]
      %v758 = vld [vmem:[%s597 + $0xb8] sm:$0xf]
      %v759 = vld [vmem:[%s597 + $0xbc] sm:$0xf]
      %v762 = vunpack.c.l.b16 %v710
      %v763 = vunpack.c.l.b16 %v711
      %v764 = vpack.c.b16 %v763, %v762
      %v769 = vunpack.c.l.b16 %v712
      %v770 = vunpack.c.l.b16 %v713
      %v771 = vunpack.c.l.b16 %v714
      %v772 = vunpack.c.l.b16 %v715
      %v773 = vpack.c.b16 %v770, %v769
      %v774 = vpack.c.b16 %v772, %v771
      %v778 = vsel %vm648, %v764, 0
      %780 = vmatpush.bf16.msra.mxu0 0
      %781 = vmatpush.bf16.msra.mxu0 0
      %782 = vmatpush.bf16.msra.mxu0 0
      %783 = vmatpush.bf16.msra.mxu0 0
      %784 = vmatpush.bf16.msra.mxu0 0
      %785 = vmatpush.bf16.msra.mxu0 0
      %786 = vmatpush.bf16.msra.mxu0 %v774
      %787 = vmatpush.bf16.msra.mxu0 %v773
      %788 = vmatmul.bf16.gmra.mxu0 %v778
      %v789 = vpop.f32.mrf.mxu0
      %v790 = vadd.f32 0.0, %v789
      %v791 = vpop.f32.mrf.mxu0
      %v792 = vadd.f32 0.0, %v791
      %793 = vdwg.mxu0
      %v798 = vunpack.c.l.b16 %v716
      %v799 = vunpack.c.l.b16 %v717
      %v800 = vunpack.c.l.b16 %v718
      %v801 = vunpack.c.l.b16 %v719
      %v802 = vpack.c.b16 %v799, %v798
      %v803 = vpack.c.b16 %v801, %v800
      %806 = vmatpush.bf16.msra.mxu0 0
      %807 = vmatpush.bf16.msra.mxu0 0
      %808 = vmatpush.bf16.msra.mxu0 0
      %809 = vmatpush.bf16.msra.mxu0 0
      %810 = vmatpush.bf16.msra.mxu0 0
      %811 = vmatpush.bf16.msra.mxu0 0
      %812 = vmatpush.bf16.msra.mxu0 %v803
      %813 = vmatpush.bf16.msra.mxu0 %v802
      %814 = vmatmul.bf16.gmra.mxu0 %v778
      %v815 = vpop.f32.mrf.mxu0
      %v816 = vadd.f32 0.0, %v815
      %v817 = vpop.f32.mrf.mxu0
      %v818 = vadd.f32 0.0, %v817
      %819 = vdwg.mxu0
      %v824 = vunpack.c.l.b16 %v720
      %v825 = vunpack.c.l.b16 %v721
      %v826 = vunpack.c.l.b16 %v722
      %v827 = vunpack.c.l.b16 %v723
      %v828 = vpack.c.b16 %v825, %v824
      %v829 = vpack.c.b16 %v827, %v826
      %832 = vmatpush.bf16.msra.mxu0 0
      %833 = vmatpush.bf16.msra.mxu0 0
      %834 = vmatpush.bf16.msra.mxu0 0
      %835 = vmatpush.bf16.msra.mxu0 0
      %836 = vmatpush.bf16.msra.mxu0 0
      %837 = vmatpush.bf16.msra.mxu0 0
      %838 = vmatpush.bf16.msra.mxu0 %v829
      %839 = vmatpush.bf16.msra.mxu0 %v828
      %840 = vmatmul.bf16.gmra.mxu0 %v778
      %v841 = vpop.f32.mrf.mxu0
      %v842 = vadd.f32 0.0, %v841
      %v843 = vpop.f32.mrf.mxu0
      %v844 = vadd.f32 0.0, %v843
      %845 = vdwg.mxu0
      %v850 = vunpack.c.l.b16 %v724
      %v851 = vunpack.c.l.b16 %v725
      %v852 = vunpack.c.l.b16 %v726
      %v853 = vunpack.c.l.b16 %v727
      %v854 = vpack.c.b16 %v851, %v850
      %v855 = vpack.c.b16 %v853, %v852
      %858 = vmatpush.bf16.msra.mxu0 0
      %859 = vmatpush.bf16.msra.mxu0 0
      %860 = vmatpush.bf16.msra.mxu0 0
      %861 = vmatpush.bf16.msra.mxu0 0
      %862 = vmatpush.bf16.msra.mxu0 0
      %863 = vmatpush.bf16.msra.mxu0 0
      %864 = vmatpush.bf16.msra.mxu0 %v855
      %865 = vmatpush.bf16.msra.mxu0 %v854
      %866 = vmatmul.bf16.gmra.mxu0 %v778
      %v867 = vpop.f32.mrf.mxu0
      %v868 = vadd.f32 0.0, %v867
      %v869 = vpop.f32.mrf.mxu0
      %v870 = vadd.f32 0.0, %v869
      %871 = vdwg.mxu0
      %v876 = vunpack.c.l.b16 %v728
      %v877 = vunpack.c.l.b16 %v729
      %v878 = vunpack.c.l.b16 %v730
      %v879 = vunpack.c.l.b16 %v731
      %v880 = vpack.c.b16 %v877, %v876
      %v881 = vpack.c.b16 %v879, %v878
      %884 = vmatpush.bf16.msra.mxu0 0
      %885 = vmatpush.bf16.msra.mxu0 0
      %886 = vmatpush.bf16.msra.mxu0 0
      %887 = vmatpush.bf16.msra.mxu0 0
      %888 = vmatpush.bf16.msra.mxu0 0
      %889 = vmatpush.bf16.msra.mxu0 0
      %890 = vmatpush.bf16.msra.mxu0 %v881
      %891 = vmatpush.bf16.msra.mxu0 %v880
      %892 = vmatmul.bf16.gmra.mxu0 %v778
      %v893 = vpop.f32.mrf.mxu0
      %v894 = vadd.f32 0.0, %v893
      %v895 = vpop.f32.mrf.mxu0
      %v896 = vadd.f32 0.0, %v895
      %897 = vdwg.mxu0
      %v902 = vunpack.c.l.b16 %v732
      %v903 = vunpack.c.l.b16 %v733
      %v904 = vunpack.c.l.b16 %v734
      %v905 = vunpack.c.l.b16 %v735
      %v906 = vpack.c.b16 %v903, %v902
      %v907 = vpack.c.b16 %v905, %v904
      %910 = vmatpush.bf16.msra.mxu0 0
      %911 = vmatpush.bf16.msra.mxu0 0
      %912 = vmatpush.bf16.msra.mxu0 0
      %913 = vmatpush.bf16.msra.mxu0 0
      %914 = vmatpush.bf16.msra.mxu0 0
      %915 = vmatpush.bf16.msra.mxu0 0
      %916 = vmatpush.bf16.msra.mxu0 %v907
      %917 = vmatpush.bf16.msra.mxu0 %v906
      %918 = vmatmul.bf16.gmra.mxu0 %v778
      %v919 = vpop.f32.mrf.mxu0
      %v920 = vadd.f32 0.0, %v919
      %v921 = vpop.f32.mrf.mxu0
      %v922 = vadd.f32 0.0, %v921
      %923 = vdwg.mxu0
      %v928 = vunpack.c.l.b16 %v736
      %v929 = vunpack.c.l.b16 %v737
      %v930 = vunpack.c.l.b16 %v738
      %v931 = vunpack.c.l.b16 %v739
      %v932 = vpack.c.b16 %v929, %v928
      %v933 = vpack.c.b16 %v931, %v930
      %936 = vmatpush.bf16.msra.mxu0 0
      %937 = vmatpush.bf16.msra.mxu0 0
      %938 = vmatpush.bf16.msra.mxu0 0
      %939 = vmatpush.bf16.msra.mxu0 0
      %940 = vmatpush.bf16.msra.mxu0 0
      %941 = vmatpush.bf16.msra.mxu0 0
      %942 = vmatpush.bf16.msra.mxu0 %v933
      %943 = vmatpush.bf16.msra.mxu0 %v932
      %944 = vmatmul.bf16.gmra.mxu0 %v778
      %v945 = vpop.f32.mrf.mxu0
      %v946 = vadd.f32 0.0, %v945
      %v947 = vpop.f32.mrf.mxu0
      %v948 = vadd.f32 0.0, %v947
      %949 = vdwg.mxu0
      %v954 = vunpack.c.l.b16 %v740
      %v955 = vunpack.c.l.b16 %v741
      %v956 = vunpack.c.l.b16 %v742
      %v957 = vunpack.c.l.b16 %v743
      %v958 = vpack.c.b16 %v955, %v954
      %v959 = vpack.c.b16 %v957, %v956
      %962 = vmatpush.bf16.msra.mxu0 0
      %963 = vmatpush.bf16.msra.mxu0 0
      %964 = vmatpush.bf16.msra.mxu0 0
      %965 = vmatpush.bf16.msra.mxu0 0
      %966 = vmatpush.bf16.msra.mxu0 0
      %967 = vmatpush.bf16.msra.mxu0 0
      %968 = vmatpush.bf16.msra.mxu0 %v959
      %969 = vmatpush.bf16.msra.mxu0 %v958
      %970 = vmatmul.bf16.gmra.mxu0 %v778
      %v971 = vpop.f32.mrf.mxu0
      %v972 = vadd.f32 0.0, %v971
      %v973 = vpop.f32.mrf.mxu0
      %v974 = vadd.f32 0.0, %v973
      %975 = vdwg.mxu0
      %v980 = vunpack.c.l.b16 %v744
      %v981 = vunpack.c.l.b16 %v745
      %v982 = vunpack.c.l.b16 %v746
      %v983 = vunpack.c.l.b16 %v747
      %v984 = vpack.c.b16 %v981, %v980
      %v985 = vpack.c.b16 %v983, %v982
      %988 = vmatpush.bf16.msra.mxu0 0
      %989 = vmatpush.bf16.msra.mxu0 0
      %990 = vmatpush.bf16.msra.mxu0 0
      %991 = vmatpush.bf16.msra.mxu0 0
      %992 = vmatpush.bf16.msra.mxu0 0
      %993 = vmatpush.bf16.msra.mxu0 0
      %994 = vmatpush.bf16.msra.mxu0 %v985
      %995 = vmatpush.bf16.msra.mxu0 %v984
      %996 = vmatmul.bf16.gmra.mxu0 %v778
      %v997 = vpop.f32.mrf.mxu0
      %v998 = vadd.f32 0.0, %v997
      %v999 = vpop.f32.mrf.mxu0
      %v1000 = vadd.f32 0.0, %v999
      %1001 = vdwg.mxu0
      %v1006 = vunpack.c.l.b16 %v748
      %v1007 = vunpack.c.l.b16 %v749
      %v1008 = vunpack.c.l.b16 %v750
      %v1009 = vunpack.c.l.b16 %v751
      %v1010 = vpack.c.b16 %v1007, %v1006
      %v1011 = vpack.c.b16 %v1009, %v1008
      %1014 = vmatpush.bf16.msra.mxu0 0
      %1015 = vmatpush.bf16.msra.mxu0 0
      %1016 = vmatpush.bf16.msra.mxu0 0
      %1017 = vmatpush.bf16.msra.mxu0 0
      %1018 = vmatpush.bf16.msra.mxu0 0
      %1019 = vmatpush.bf16.msra.mxu0 0
      %1020 = vmatpush.bf16.msra.mxu0 %v1011
      %1021 = vmatpush.bf16.msra.mxu0 %v1010
      %1022 = vmatmul.bf16.gmra.mxu0 %v778
      %v1023 = vpop.f32.mrf.mxu0
      %v1024 = vadd.f32 0.0, %v1023
      %v1025 = vpop.f32.mrf.mxu0
      %v1026 = vadd.f32 0.0, %v1025
      %1027 = vdwg.mxu0
      %v1032 = vunpack.c.l.b16 %v752
      %v1033 = vunpack.c.l.b16 %v753
      %v1034 = vunpack.c.l.b16 %v754
      %v1035 = vunpack.c.l.b16 %v755
      %v1036 = vpack.c.b16 %v1033, %v1032
      %v1037 = vpack.c.b16 %v1035, %v1034
      %1040 = vmatpush.bf16.msra.mxu0 0
      %1041 = vmatpush.bf16.msra.mxu0 0
      %1042 = vmatpush.bf16.msra.mxu0 0
      %1043 = vmatpush.bf16.msra.mxu0 0
      %1044 = vmatpush.bf16.msra.mxu0 0
      %1045 = vmatpush.bf16.msra.mxu0 0
      %1046 = vmatpush.bf16.msra.mxu0 %v1037
      %1047 = vmatpush.bf16.msra.mxu0 %v1036
      %1048 = vmatmul.bf16.gmra.mxu0 %v778
      %v1049 = vpop.f32.mrf.mxu0
      %v1050 = vadd.f32 0.0, %v1049
      %v1051 = vpop.f32.mrf.mxu0
      %v1052 = vadd.f32 0.0, %v1051
      %1053 = vdwg.mxu0
      %v1058 = vunpack.c.l.b16 %v756
      %v1059 = vunpack.c.l.b16 %v757
      %v1060 = vunpack.c.l.b16 %v758
      %v1061 = vunpack.c.l.b16 %v759
      %v1062 = vpack.c.b16 %v1059, %v1058
      %v1063 = vpack.c.b16 %v1061, %v1060
      %1066 = vmatpush.bf16.msra.mxu0 0
      %1067 = vmatpush.bf16.msra.mxu0 0
      %1068 = vmatpush.bf16.msra.mxu0 0
      %1069 = vmatpush.bf16.msra.mxu0 0
      %1070 = vmatpush.bf16.msra.mxu0 0
      %1071 = vmatpush.bf16.msra.mxu0 0
      %1072 = vmatpush.bf16.msra.mxu0 %v1063
      %1073 = vmatpush.bf16.msra.mxu0 %v1062
      %1074 = vmatmul.bf16.gmra.mxu0 %v778
      %v1075 = vpop.f32.mrf.mxu0
      %v1076 = vadd.f32 0.0, %v1075
      %v1077 = vpop.f32.mrf.mxu0
      %v1078 = vadd.f32 0.0, %v1077
      %1079 = vdwg.mxu0
      %v1080 = vpack.c.bf16 %v790, %v790
      %v1081 = vpack.c.bf16 %v792, %v792
      %v1082 = vpack.c.bf16 %v816, %v816
      %v1083 = vpack.c.bf16 %v818, %v818
      %v1084 = vpack.c.bf16 %v842, %v842
      %v1085 = vpack.c.bf16 %v844, %v844
      %v1086 = vpack.c.bf16 %v868, %v868
      %v1087 = vpack.c.bf16 %v870, %v870
      %v1088 = vpack.c.bf16 %v894, %v894
      %v1089 = vpack.c.bf16 %v896, %v896
      %v1090 = vpack.c.bf16 %v920, %v920
      %v1091 = vpack.c.bf16 %v922, %v922
      %v1092 = vpack.c.bf16 %v946, %v946
      %v1093 = vpack.c.bf16 %v948, %v948
      %v1094 = vpack.c.bf16 %v972, %v972
      %v1095 = vpack.c.bf16 %v974, %v974
      %v1096 = vpack.c.bf16 %v998, %v998
      %v1097 = vpack.c.bf16 %v1000, %v1000
      %v1098 = vpack.c.bf16 %v1024, %v1024
      %v1099 = vpack.c.bf16 %v1026, %v1026
      %v1100 = vpack.c.bf16 %v1050, %v1050
      %v1101 = vpack.c.bf16 %v1052, %v1052
      %v1102 = vpack.c.bf16 %v1076, %v1076
      %v1103 = vpack.c.bf16 %v1078, %v1078
      %v1106 = vunpack.c.l.b16 %v1080
      %v1107 = vunpack.c.l.b16 %v1081
      %v1108 = vpack.c.b16 %v1107, %v1106
      %v1111 = vunpack.c.l.b16 %v1088
      %v1112 = vunpack.c.l.b16 %v1089
      %v1113 = vpack.c.b16 %v1112, %v1111
      %vm1114 = vcmask 64512
      %v1116 = vsel %vm1114, %v1108, 0
      %v1119 = vsel %vm1114, %v1113, 0
      %1121 = vmatpush.bf16.xpose.msra.mxu0 0
      %1122 = vmatpush.bf16.xpose.msra.mxu0 0
      %1123 = vmatpush.bf16.xpose.msra.mxu0 0
      %1124 = vmatpush.bf16.xpose.msra.mxu0 0
      %1125 = vmatpush.bf16.xpose.msra.mxu0 0
      %1126 = vmatpush.bf16.xpose.msra.mxu0 0
      %1127 = vmatpush.bf16.xpose.msra.mxu0 0
      %1128 = vmatpush.bf16.xpose.msra.mxu0 %v1119
      %1129 = vmatmul.bf16.gmra.mxu0 %v1116
      %v1130 = vpop.f32.mrf.mxu0
      %v1131 = vadd.f32 0.0, %v1130
      %v1132 = vpop.f32.mrf.mxu0
      %v1133 = vadd.f32 0.0, %v1132
      %1134 = vdwg.mxu0
      %v1137 = vunpack.c.l.b16 %v1082
      %v1138 = vunpack.c.l.b16 %v1083
      %v1139 = vpack.c.b16 %v1138, %v1137
      %v1142 = vunpack.c.l.b16 %v1090
      %v1143 = vunpack.c.l.b16 %v1091
      %v1144 = vpack.c.b16 %v1143, %v1142
      %v1146 = vsel %vm1114, %v1139, 0
      %v1149 = vsel %vm1114, %v1144, 0
      %1151 = vmatpush.bf16.xpose.msra.mxu0 0
      %1152 = vmatpush.bf16.xpose.msra.mxu0 0
      %1153 = vmatpush.bf16.xpose.msra.mxu0 0
      %1154 = vmatpush.bf16.xpose.msra.mxu0 0
      %1155 = vmatpush.bf16.xpose.msra.mxu0 0
      %1156 = vmatpush.bf16.xpose.msra.mxu0 0
      %1157 = vmatpush.bf16.xpose.msra.mxu0 0
      %1158 = vmatpush.bf16.xpose.msra.mxu0 %v1149
      %1159 = vmatmul.bf16.gmra.mxu0 %v1146
      %v1160 = vpop.f32.mrf.mxu0
      %v1161 = vadd.f32 0.0, %v1160
      %v1162 = vpop.f32.mrf.mxu0
      %v1163 = vadd.f32 0.0, %v1162
      %1164 = vdwg.mxu0
      %v1167 = vunpack.c.l.b16 %v1084
      %v1168 = vunpack.c.l.b16 %v1085
      %v1169 = vpack.c.b16 %v1168, %v1167
      %v1172 = vunpack.c.l.b16 %v1092
      %v1173 = vunpack.c.l.b16 %v1093
      %v1174 = vpack.c.b16 %v1173, %v1172
      %v1176 = vsel %vm1114, %v1169, 0
      %v1179 = vsel %vm1114, %v1174, 0
      %1181 = vmatpush.bf16.xpose.msra.mxu0 0
      %1182 = vmatpush.bf16.xpose.msra.mxu0 0
      %1183 = vmatpush.bf16.xpose.msra.mxu0 0
      %1184 = vmatpush.bf16.xpose.msra.mxu0 0
      %1185 = vmatpush.bf16.xpose.msra.mxu0 0
      %1186 = vmatpush.bf16.xpose.msra.mxu0 0
      %1187 = vmatpush.bf16.xpose.msra.mxu0 0
      %1188 = vmatpush.bf16.xpose.msra.mxu0 %v1179
      %1189 = vmatmul.bf16.gmra.mxu0 %v1176
      %v1190 = vpop.f32.mrf.mxu0
      %v1191 = vadd.f32 0.0, %v1190
      %v1192 = vpop.f32.mrf.mxu0
      %v1193 = vadd.f32 0.0, %v1192
      %1194 = vdwg.mxu0
      %v1197 = vunpack.c.l.b16 %v1086
      %v1198 = vunpack.c.l.b16 %v1087
      %v1199 = vpack.c.b16 %v1198, %v1197
      %v1202 = vunpack.c.l.b16 %v1094
      %v1203 = vunpack.c.l.b16 %v1095
      %v1204 = vpack.c.b16 %v1203, %v1202
      %v1206 = vsel %vm1114, %v1199, 0
      %v1209 = vsel %vm1114, %v1204, 0
      %1211 = vmatpush.bf16.xpose.msra.mxu0 0
      %1212 = vmatpush.bf16.xpose.msra.mxu0 0
      %1213 = vmatpush.bf16.xpose.msra.mxu0 0
      %1214 = vmatpush.bf16.xpose.msra.mxu0 0
      %1215 = vmatpush.bf16.xpose.msra.mxu0 0
      %1216 = vmatpush.bf16.xpose.msra.mxu0 0
      %1217 = vmatpush.bf16.xpose.msra.mxu0 0
      %1218 = vmatpush.bf16.xpose.msra.mxu0 %v1209
      %1219 = vmatmul.bf16.gmra.mxu0 %v1206
      %v1220 = vpop.f32.mrf.mxu0
      %v1221 = vadd.f32 0.0, %v1220
      %v1222 = vpop.f32.mrf.mxu0
      %v1223 = vadd.f32 0.0, %v1222
      %1224 = vdwg.mxu0
      %v1225 = vmul.f32 %v1131, 0.35355338
      %v1226 = vmul.f32 %v1133, 0.35355338
      %v1227 = vmul.f32 %v1161, 0.35355338
      %v1228 = vmul.f32 %v1163, 0.35355338
      %v1229 = vmul.f32 %v1191, 0.35355338
      %v1230 = vmul.f32 %v1193, 0.35355338
      %v1231 = vmul.f32 %v1221, 0.35355338
      %v1232 = vmul.f32 %v1223, 0.35355338
      %v1233 = vld [vmem:[%s1] sm:$0xff]
      %v1234 = vld [vmem:[%s1 + $0x8] sm:$0xff]
      %v1235 = vadd.f32 %v1225, %v1233
      %v1236 = vadd.f32 %v1226, %v1234
      %v1237 = vadd.f32 %v1227, %v1233
      %v1238 = vadd.f32 %v1228, %v1234
      %v1239 = vadd.f32 %v1229, %v1233
      %v1240 = vadd.f32 %v1230, %v1234
      %v1241 = vadd.f32 %v1231, %v1233
      %v1242 = vadd.f32 %v1232, %v1234
      %vm1243 = vcmask 130048
      %v1244 = vsel %vm1243, %v1235, -inf
      %1245 = vmax.xlane.f32.xlu0 %v1244
      %v1246 = vpop.xlane.xlu0 %1245
      %v1247 = vsel %vm1243, %v1236, -inf
      %1248 = vmax.xlane.f32.xlu0 %v1247
      %v1249 = vpop.xlane.xlu0 %1248
      %v1250 = vsel %vm1243, %v1237, -inf
      %1251 = vmax.xlane.f32.xlu0 %v1250
      %v1252 = vpop.xlane.xlu0 %1251
      %v1253 = vsel %vm1243, %v1238, -inf
      %1254 = vmax.xlane.f32.xlu0 %v1253
      %v1255 = vpop.xlane.xlu0 %1254
      %v1256 = vsel %vm1243, %v1239, -inf
      %1257 = vmax.xlane.f32.xlu0 %v1256
      %v1258 = vpop.xlane.xlu0 %1257
      %v1259 = vsel %vm1243, %v1240, -inf
      %1260 = vmax.xlane.f32.xlu0 %v1259
      %v1261 = vpop.xlane.xlu0 %1260
      %v1262 = vsel %vm1243, %v1241, -inf
      %1263 = vmax.xlane.f32.xlu0 %v1262
      %v1264 = vpop.xlane.xlu0 %1263
      %v1265 = vsel %vm1243, %v1242, -inf
      %1266 = vmax.xlane.f32.xlu0 %v1265
      %v1267 = vpop.xlane.xlu0 %1266
      %v1268 = vsub.f32 %v1235, %v1246
      %v1269 = vsub.f32 %v1236, %v1249
      %v1270 = vsub.f32 %v1237, %v1252
      %v1271 = vsub.f32 %v1238, %v1255
      %v1272 = vsub.f32 %v1239, %v1258
      %v1273 = vsub.f32 %v1240, %v1261
      %v1274 = vsub.f32 %v1241, %v1264
      %v1275 = vsub.f32 %v1242, %v1267
      %v1276 = vmul.f32 %v1268, 1.442695
      %v1277 = vpow.pop %v1276
      %v1278 = vmul.f32 %v1269, 1.442695
      %v1279 = vpow.pop %v1278
      %v1280 = vmul.f32 %v1270, 1.442695
      %v1281 = vpow.pop %v1280
      %v1282 = vmul.f32 %v1271, 1.442695
      %v1283 = vpow.pop %v1282
      %v1284 = vmul.f32 %v1272, 1.442695
      %v1285 = vpow.pop %v1284
      %v1286 = vmul.f32 %v1273, 1.442695
      %v1287 = vpow.pop %v1286
      %v1288 = vmul.f32 %v1274, 1.442695
      %v1289 = vpow.pop %v1288
      %v1290 = vmul.f32 %v1275, 1.442695
      %v1291 = vpow.pop %v1290
      %v1292 = vsel %vm1243, %v1277, 0.0
      %1293 = vadd.xlane.f32.xlu0 %v1292
      %v1294 = vpop.xlane.xlu0 %1293
      %v1295 = vsel %vm1243, %v1279, 0.0
      %1296 = vadd.xlane.f32.xlu0 %v1295
      %v1297 = vpop.xlane.xlu0 %1296
      %v1298 = vsel %vm1243, %v1281, 0.0
      %1299 = vadd.xlane.f32.xlu0 %v1298
      %v1300 = vpop.xlane.xlu0 %1299
      %v1301 = vsel %vm1243, %v1283, 0.0
      %1302 = vadd.xlane.f32.xlu0 %v1301
      %v1303 = vpop.xlane.xlu0 %1302
      %v1304 = vsel %vm1243, %v1285, 0.0
      %1305 = vadd.xlane.f32.xlu0 %v1304
      %v1306 = vpop.xlane.xlu0 %1305
      %v1307 = vsel %vm1243, %v1287, 0.0
      %1308 = vadd.xlane.f32.xlu0 %v1307
      %v1309 = vpop.xlane.xlu0 %1308
      %v1310 = vsel %vm1243, %v1289, 0.0
      %1311 = vadd.xlane.f32.xlu0 %v1310
      %v1312 = vpop.xlane.xlu0 %1311
      %v1313 = vsel %vm1243, %v1291, 0.0
      %1314 = vadd.xlane.f32.xlu0 %v1313
      %v1315 = vpop.xlane.xlu0 %1314
      %v1316 = vrcp.pop %v1294
      %v1317 = vmul.f32 %v1294, %v1316
      %v1318 = vsub.f32 1.0, %v1317
      %v1319 = vmul.f32 %v1316, %v1318
      %v1320 = vadd.f32 %v1316, %v1319
      %vm1321 = vweird.f32 %v1294
      %vm1322 = vweird.f32 %v1316
      %vm1323 = vmor %vm1321, %vm1322
      %v1324 = vsel %vm1323, %v1316, %v1320
      %v1325 = vand.u32 2147483647, %v1294
      %vm1326 = vcmp.eq.f32.partialorder %v1325, 8.507059e+37
      %v1327 = vand.u32 %v1294, 2147483648
      %v1328 = vor.u32 1.1754944e-38, %v1327
      %v1329 = vsel %vm1326, %v1328, %v1324
      %v1330 = vmul.f32 %v1277, %v1329
      %v1331 = vrcp.pop %v1297
      %v1332 = vmul.f32 %v1297, %v1331
      %v1333 = vsub.f32 1.0, %v1332
      %v1334 = vmul.f32 %v1331, %v1333
      %v1335 = vadd.f32 %v1331, %v1334
      %vm1336 = vweird.f32 %v1297
      %vm1337 = vweird.f32 %v1331
      %vm1338 = vmor %vm1336, %vm1337
      %v1339 = vsel %vm1338, %v1331, %v1335
      %v1340 = vand.u32 2147483647, %v1297
      %vm1341 = vcmp.eq.f32.partialorder %v1340, 8.507059e+37
      %v1342 = vand.u32 %v1297, 2147483648
      %v1343 = vor.u32 1.1754944e-38, %v1342
      %v1344 = vsel %vm1341, %v1343, %v1339
      %v1345 = vmul.f32 %v1279, %v1344
      %v1346 = vrcp.pop %v1300
      %v1347 = vmul.f32 %v1300, %v1346
      %v1348 = vsub.f32 1.0, %v1347
      %v1349 = vmul.f32 %v1346, %v1348
      %v1350 = vadd.f32 %v1346, %v1349
      %vm1351 = vweird.f32 %v1300
      %vm1352 = vweird.f32 %v1346
      %vm1353 = vmor %vm1351, %vm1352
      %v1354 = vsel %vm1353, %v1346, %v1350
      %v1355 = vand.u32 2147483647, %v1300
      %vm1356 = vcmp.eq.f32.partialorder %v1355, 8.507059e+37
      %v1357 = vand.u32 %v1300, 2147483648
      %v1358 = vor.u32 1.1754944e-38, %v1357
      %v1359 = vsel %vm1356, %v1358, %v1354
      %v1360 = vmul.f32 %v1281, %v1359
      %v1361 = vrcp.pop %v1303
      %v1362 = vmul.f32 %v1303, %v1361
      %v1363 = vsub.f32 1.0, %v1362
      %v1364 = vmul.f32 %v1361, %v1363
      %v1365 = vadd.f32 %v1361, %v1364
      %vm1366 = vweird.f32 %v1303
      %vm1367 = vweird.f32 %v1361
      %vm1368 = vmor %vm1366, %vm1367
      %v1369 = vsel %vm1368, %v1361, %v1365
      %v1370 = vand.u32 2147483647, %v1303
      %vm1371 = vcmp.eq.f32.partialorder %v1370, 8.507059e+37
      %v1372 = vand.u32 %v1303, 2147483648
      %v1373 = vor.u32 1.1754944e-38, %v1372
      %v1374 = vsel %vm1371, %v1373, %v1369
      %v1375 = vmul.f32 %v1283, %v1374
      %v1376 = vrcp.pop %v1306
      %v1377 = vmul.f32 %v1306, %v1376
      %v1378 = vsub.f32 1.0, %v1377
      %v1379 = vmul.f32 %v1376, %v1378
      %v1380 = vadd.f32 %v1376, %v1379
      %vm1381 = vweird.f32 %v1306
      %vm1382 = vweird.f32 %v1376
      %vm1383 = vmor %vm1381, %vm1382
      %v1384 = vsel %vm1383, %v1376, %v1380
      %v1385 = vand.u32 2147483647, %v1306
      %vm1386 = vcmp.eq.f32.partialorder %v1385, 8.507059e+37
      %v1387 = vand.u32 %v1306, 2147483648
      %v1388 = vor.u32 1.1754944e-38, %v1387
      %v1389 = vsel %vm1386, %v1388, %v1384
      %v1390 = vmul.f32 %v1285, %v1389
      %v1391 = vrcp.pop %v1309
      %v1392 = vmul.f32 %v1309, %v1391
      %v1393 = vsub.f32 1.0, %v1392
      %v1394 = vmul.f32 %v1391, %v1393
      %v1395 = vadd.f32 %v1391, %v1394
      %vm1396 = vweird.f32 %v1309
      %vm1397 = vweird.f32 %v1391
      %vm1398 = vmor %vm1396, %vm1397
      %v1399 = vsel %vm1398, %v1391, %v1395
      %v1400 = vand.u32 2147483647, %v1309
      %vm1401 = vcmp.eq.f32.partialorder %v1400, 8.507059e+37
      %v1402 = vand.u32 %v1309, 2147483648
      %v1403 = vor.u32 1.1754944e-38, %v1402
      %v1404 = vsel %vm1401, %v1403, %v1399
      %v1405 = vmul.f32 %v1287, %v1404
      %v1406 = vrcp.pop %v1312
      %v1407 = vmul.f32 %v1312, %v1406
      %v1408 = vsub.f32 1.0, %v1407
      %v1409 = vmul.f32 %v1406, %v1408
      %v1410 = vadd.f32 %v1406, %v1409
      %vm1411 = vweird.f32 %v1312
      %vm1412 = vweird.f32 %v1406
      %vm1413 = vmor %vm1411, %vm1412
      %v1414 = vsel %vm1413, %v1406, %v1410
      %v1415 = vand.u32 2147483647, %v1312
      %vm1416 = vcmp.eq.f32.partialorder %v1415, 8.507059e+37
      %v1417 = vand.u32 %v1312, 2147483648
      %v1418 = vor.u32 1.1754944e-38, %v1417
      %v1419 = vsel %vm1416, %v1418, %v1414
      %v1420 = vmul.f32 %v1289, %v1419
      %v1421 = vrcp.pop %v1315
      %v1422 = vmul.f32 %v1315, %v1421
      %v1423 = vsub.f32 1.0, %v1422
      %v1424 = vmul.f32 %v1421, %v1423
      %v1425 = vadd.f32 %v1421, %v1424
      %vm1426 = vweird.f32 %v1315
      %vm1427 = vweird.f32 %v1421
      %vm1428 = vmor %vm1426, %vm1427
      %v1429 = vsel %vm1428, %v1421, %v1425
      %v1430 = vand.u32 2147483647, %v1315
      %vm1431 = vcmp.eq.f32.partialorder %v1430, 8.507059e+37
      %v1432 = vand.u32 %v1315, 2147483648
      %v1433 = vor.u32 1.1754944e-38, %v1432
      %v1434 = vsel %vm1431, %v1433, %v1429
      %v1435 = vmul.f32 %v1291, %v1434
      %v1436 = vpack.c.bf16 %v1330, %v1330
      %v1437 = vpack.c.bf16 %v1345, %v1345
      %v1438 = vpack.c.bf16 %v1360, %v1360
      %v1439 = vpack.c.bf16 %v1375, %v1375
      %v1440 = vpack.c.bf16 %v1390, %v1390
      %v1441 = vpack.c.bf16 %v1405, %v1405
      %v1442 = vpack.c.bf16 %v1420, %v1420
      %v1443 = vpack.c.bf16 %v1435, %v1435
      %v1446 = vunpack.c.l.b16 %v1436
      %v1447 = vunpack.c.l.b16 %v1437
      %v1448 = vpack.c.b16 %v1447, %v1446
      %v1451 = vunpack.c.l.b16 %v1096
      %v1452 = vunpack.c.l.b16 %v1097
      %v1453 = vpack.c.b16 %v1452, %v1451
      %v1456 = vsel %vm1243, %v1448, 0
      %1458 = vmatpush.bf16.msra.mxu0 0
      %1459 = vmatpush.bf16.msra.mxu0 0
      %1460 = vmatpush.bf16.msra.mxu0 0
      %1461 = vmatpush.bf16.msra.mxu0 0
      %1462 = vmatpush.bf16.msra.mxu0 0
      %1463 = vmatpush.bf16.msra.mxu0 0
      %1464 = vmatpush.bf16.msra.mxu0 0
      %1465 = vmatpush.bf16.msra.mxu0 %v1453
      %1466 = vmatmul.bf16.gmra.mxu0 %v1456
      %v1467 = vpop.f32.mrf.mxu0
      %v1468 = vadd.f32 0.0, %v1467
      %v1469 = vpop.f32.mrf.mxu0
      %v1470 = vadd.f32 0.0, %v1469
      %1471 = vdwg.mxu0
      %v1474 = vunpack.c.l.b16 %v1438
      %v1475 = vunpack.c.l.b16 %v1439
      %v1476 = vpack.c.b16 %v1475, %v1474
      %v1479 = vunpack.c.l.b16 %v1098
      %v1480 = vunpack.c.l.b16 %v1099
      %v1481 = vpack.c.b16 %v1480, %v1479
      %v1484 = vsel %vm1243, %v1476, 0
      %1486 = vmatpush.bf16.msra.mxu0 0
      %1487 = vmatpush.bf16.msra.mxu0 0
      %1488 = vmatpush.bf16.msra.mxu0 0
      %1489 = vmatpush.bf16.msra.mxu0 0
      %1490 = vmatpush.bf16.msra.mxu0 0
      %1491 = vmatpush.bf16.msra.mxu0 0
      %1492 = vmatpush.bf16.msra.mxu0 0
      %1493 = vmatpush.bf16.msra.mxu0 %v1481
      %1494 = vmatmul.bf16.gmra.mxu0 %v1484
      %v1495 = vpop.f32.mrf.mxu0
      %v1496 = vadd.f32 0.0, %v1495
      %v1497 = vpop.f32.mrf.mxu0
      %v1498 = vadd.f32 0.0, %v1497
      %1499 = vdwg.mxu0
      %v1502 = vunpack.c.l.b16 %v1440
      %v1503 = vunpack.c.l.b16 %v1441
      %v1504 = vpack.c.b16 %v1503, %v1502
      %v1507 = vunpack.c.l.b16 %v1100
      %v1508 = vunpack.c.l.b16 %v1101
      %v1509 = vpack.c.b16 %v1508, %v1507
      %v1512 = vsel %vm1243, %v1504, 0
      %1514 = vmatpush.bf16.msra.mxu0 0
      %1515 = vmatpush.bf16.msra.mxu0 0
      %1516 = vmatpush.bf16.msra.mxu0 0
      %1517 = vmatpush.bf16.msra.mxu0 0
      %1518 = vmatpush.bf16.msra.mxu0 0
      %1519 = vmatpush.bf16.msra.mxu0 0
      %1520 = vmatpush.bf16.msra.mxu0 0
      %1521 = vmatpush.bf16.msra.mxu0 %v1509
      %1522 = vmatmul.bf16.gmra.mxu0 %v1512
      %v1523 = vpop.f32.mrf.mxu0
      %v1524 = vadd.f32 0.0, %v1523
      %v1525 = vpop.f32.mrf.mxu0
      %v1526 = vadd.f32 0.0, %v1525
      %1527 = vdwg.mxu0
      %v1530 = vunpack.c.l.b16 %v1442
      %v1531 = vunpack.c.l.b16 %v1443
      %v1532 = vpack.c.b16 %v1531, %v1530
      %v1535 = vunpack.c.l.b16 %v1102
      %v1536 = vunpack.c.l.b16 %v1103
      %v1537 = vpack.c.b16 %v1536, %v1535
      %v1540 = vsel %vm1243, %v1532, 0
      %1542 = vmatpush.bf16.msra.mxu0 0
      %1543 = vmatpush.bf16.msra.mxu0 0
      %1544 = vmatpush.bf16.msra.mxu0 0
      %1545 = vmatpush.bf16.msra.mxu0 0
      %1546 = vmatpush.bf16.msra.mxu0 0
      %1547 = vmatpush.bf16.msra.mxu0 0
      %1548 = vmatpush.bf16.msra.mxu0 0
      %1549 = vmatpush.bf16.msra.mxu0 %v1537
      %1550 = vmatmul.bf16.gmra.mxu0 %v1540
      %v1551 = vpop.f32.mrf.mxu0
      %v1552 = vadd.f32 0.0, %v1551
      %v1553 = vpop.f32.mrf.mxu0
      %v1554 = vadd.f32 0.0, %v1553
      %1555 = vdwg.mxu0
      %v1556 = vpack.c.bf16 %v1468, %v1468
      %v1557 = vpack.c.bf16 %v1470, %v1470
      %v1558 = vpack.c.bf16 %v1496, %v1496
      %v1559 = vpack.c.bf16 %v1498, %v1498
      %v1560 = vpack.c.bf16 %v1524, %v1524
      %v1561 = vpack.c.bf16 %v1526, %v1526
      %v1562 = vpack.c.bf16 %v1552, %v1552
      %v1563 = vpack.c.bf16 %v1554, %v1554
      %v1564 = vld [vmem:[%s602] sm:$0xf]
      %v1565 = vld [vmem:[%s602 + $0x4] sm:$0xf]
      %v1566 = vld [vmem:[%s602 + $0x8] sm:$0xf]
      %v1567 = vld [vmem:[%s602 + $0xc] sm:$0xf]
      %v1570 = vunpack.c.l.b16 %v1556
      %v1571 = vunpack.c.l.b16 %v1557
      %v1572 = vpack.c.b16 %v1571, %v1570
      %v1574 = vsel %vm1114, %v1572, 0
      %vm1576 = vcmask 1043456
      %v1578 = vsel %vm1576, %v1564, 0
      %1580 = vmatpush.bf16.msra.mxu0 0
      %1581 = vmatpush.bf16.msra.mxu0 0
      %1582 = vmatpush.bf16.msra.mxu0 0
      %1583 = vmatpush.bf16.msra.mxu0 0
      %1584 = vmatpush.bf16.msra.mxu0 0
      %1585 = vmatpush.bf16.msra.mxu0 0
      %1586 = vmatpush.bf16.msra.mxu0 0
      %1587 = vmatpush.bf16.msra.mxu0 %v1578
      %1588 = vmatmul.bf16.gmra.mxu0 %v1574
      %v1589 = vpop.f32.mrf.mxu0
      %v1590 = vadd.f32 0.0, %v1589
      %v1591 = vpop.f32.mrf.mxu0
      %v1592 = vadd.f32 0.0, %v1591
      %1593 = vdwg.mxu0
      %v1596 = vunpack.c.l.b16 %v1558
      %v1597 = vunpack.c.l.b16 %v1559
      %v1598 = vpack.c.b16 %v1597, %v1596
      %v1600 = vsel %vm1114, %v1598, 0
      %v1603 = vsel %vm1576, %v1565, 0
      %1605 = vmatpush.bf16.msra.mxu0 0
      %1606 = vmatpush.bf16.msra.mxu0 0
      %1607 = vmatpush.bf16.msra.mxu0 0
      %1608 = vmatpush.bf16.msra.mxu0 0
      %1609 = vmatpush.bf16.msra.mxu0 0
      %1610 = vmatpush.bf16.msra.mxu0 0
      %1611 = vmatpush.bf16.msra.mxu0 0
      %1612 = vmatpush.bf16.msra.mxu0 %v1603
      %1613 = vmatmul.bf16.gmra.mxu0 %v1600
      %v1614 = vpop.f32.mrf.mxu0
      %v1615 = vadd.f32 0.0, %v1614
      %v1616 = vpop.f32.mrf.mxu0
      %v1617 = vadd.f32 0.0, %v1616
      %1618 = vdwg.mxu0
      %v1621 = vunpack.c.l.b16 %v1560
      %v1622 = vunpack.c.l.b16 %v1561
      %v1623 = vpack.c.b16 %v1622, %v1621
      %v1625 = vsel %vm1114, %v1623, 0
      %v1628 = vsel %vm1576, %v1566, 0
      %1630 = vmatpush.bf16.msra.mxu0 0
      %1631 = vmatpush.bf16.msra.mxu0 0
      %1632 = vmatpush.bf16.msra.mxu0 0
      %1633 = vmatpush.bf16.msra.mxu0 0
      %1634 = vmatpush.bf16.msra.mxu0 0
      %1635 = vmatpush.bf16.msra.mxu0 0
      %1636 = vmatpush.bf16.msra.mxu0 0
      %1637 = vmatpush.bf16.msra.mxu0 %v1628
      %1638 = vmatmul.bf16.gmra.mxu0 %v1625
      %v1639 = vpop.f32.mrf.mxu0
      %v1640 = vadd.f32 0.0, %v1639
      %v1641 = vpop.f32.mrf.mxu0
      %v1642 = vadd.f32 0.0, %v1641
      %1643 = vdwg.mxu0
      %v1646 = vunpack.c.l.b16 %v1562
      %v1647 = vunpack.c.l.b16 %v1563
      %v1648 = vpack.c.b16 %v1647, %v1646
      %v1650 = vsel %vm1114, %v1648, 0
      %v1653 = vsel %vm1576, %v1567, 0
      %1655 = vmatpush.bf16.msra.mxu0 0
      %1656 = vmatpush.bf16.msra.mxu0 0
      %1657 = vmatpush.bf16.msra.mxu0 0
      %1658 = vmatpush.bf16.msra.mxu0 0
      %1659 = vmatpush.bf16.msra.mxu0 0
      %1660 = vmatpush.bf16.msra.mxu0 0
      %1661 = vmatpush.bf16.msra.mxu0 0
      %1662 = vmatpush.bf16.msra.mxu0 %v1653
      %1663 = vmatmul.bf16.gmra.mxu0 %v1650
      %v1664 = vpop.f32.mrf.mxu0
      %v1665 = vadd.f32 0.0, %v1664
      %v1666 = vpop.f32.mrf.mxu0
      %v1667 = vadd.f32 0.0, %v1666
      %1668 = vdwg.mxu0
      %v1669 = vsel %vm648, %v1590, 0.0
      %v1670 = vsel %vm648, %v1615, 0.0
      %v1671 = vadd.f32 %v1669, %v1670
      %v1672 = vsel %vm648, %v1640, 0.0
      %v1673 = vadd.f32 %v1671, %v1672
      %v1674 = vsel %vm648, %v1665, 0.0
      %v1675 = vadd.f32 %v1673, %v1674
      %v1676 = vsel %vm648, %v1592, 0.0
      %v1677 = vsel %vm648, %v1617, 0.0
      %v1678 = vadd.f32 %v1676, %v1677
      %v1679 = vsel %vm648, %v1642, 0.0
      %v1680 = vadd.f32 %v1678, %v1679
      %v1681 = vsel %vm648, %v1667, 0.0
      %v1682 = vadd.f32 %v1680, %v1681
      %v1683 = vadd.f32 %v644, %v1675
      %v1684 = vadd.f32 %v645, %v1682
      %v1685 = vld [vmem:[%s605] sm:$0x1]
      %v1687 = vperm.slane %v1685, 0
      %v1689 = vadd.f32 %v1683, %v1687
      %v1690 = vadd.f32 %v1684, %v1687
      %v1691 = vld [vmem:[%s608] sm:$0x1]
      %v1692 = vld [vmem:[%s611] sm:$0x1]
      %v1693 = vsel %vm648, %v1689, 0.0
      %1694 = vadd.xlane.f32.xlu0 %v1693
      %v1695 = vpop.xlane.xlu0 %1694
      %v1696 = vsel %vm648, %v1690, 0.0
      %1697 = vadd.xlane.f32.xlu0 %v1696
      %v1698 = vpop.xlane.xlu0 %1697
      %v1699 = vmul.f32 %v1695, %v661
      %v1700 = vmul.f32 %v1698, %v661
      %v1701 = vsub.f32 %v1689, %v1699
      %v1702 = vsub.f32 %v1690, %v1700
      %v1703 = vmul.f32 %v1701, %v1701
      %v1704 = vmul.f32 %v1702, %v1702
      %v1705 = vsel %vm648, %v1703, 0.0
      %1706 = vadd.xlane.f32.xlu0 %v1705
      %v1707 = vpop.xlane.xlu0 %1706
      %v1708 = vsel %vm648, %v1704, 0.0
      %1709 = vadd.xlane.f32.xlu0 %v1708
      %v1710 = vpop.xlane.xlu0 %1709
      %v1711 = vmul.f32 %v1707, %v661
      %v1712 = vmul.f32 %v1710, %v661
      %v1713 = vadd.f32 %v1711, 1e-05
      %v1714 = vadd.f32 %v1712, 1e-05
      %v1715 = vrsqrt.pop %v1713
      %v1716 = vmul.f32 %v1715, %v1713
      %v1717 = vmul.f32 %v1716, %v1715
      %v1718 = vmul.f32 0.5, %v1717
      %v1719 = vsub.f32 1.5, %v1718
      %v1720 = vmul.f32 %v1715, %v1719
      %vm1721 = vweird.f32 %v1713
      %vm1722 = vweird.f32 %v1715
      %vm1723 = vmor %vm1721, %vm1722
      %v1724 = vsel %vm1723, %v1715, %v1720
      %v1725 = vrsqrt.pop %v1714
      %v1726 = vmul.f32 %v1725, %v1714
      %v1727 = vmul.f32 %v1726, %v1725
      %v1728 = vmul.f32 0.5, %v1727
      %v1729 = vsub.f32 1.5, %v1728
      %v1730 = vmul.f32 %v1725, %v1729
      %vm1731 = vweird.f32 %v1714
      %vm1732 = vweird.f32 %v1725
      %vm1733 = vmor %vm1731, %vm1732
      %v1734 = vsel %vm1733, %v1725, %v1730
      %v1735 = vmul.f32 %v1701, %v1724
      %v1736 = vmul.f32 %v1702, %v1734
      %v1738 = vperm.slane %v1691, 0
      %v1740 = vmul.f32 %v1735, %v1738
      %v1741 = vmul.f32 %v1736, %v1738
      %v1743 = vperm.slane %v1692, 0
      %v1745 = vadd.f32 %v1740, %v1743
      %v1746 = vadd.f32 %v1741, %v1743
      %v1747 = vpack.c.bf16 %v1746, %v1745
      %v1748 = vld [vmem:[%s616] sm:$0xf]
      %v1749 = vld [vmem:[%s616 + $0x4] sm:$0xf]
      %v1750 = vld [vmem:[%s616 + $0x8] sm:$0xf]
      %v1751 = vld [vmem:[%s616 + $0xc] sm:$0xf]
      %v1752 = vld [vmem:[%s619] sm:$0x1]
      %v1754 = vperm.slane %v1752, 0
      %v1760 = vunpack.c.l.b16 %v1748
      %v1761 = vunpack.c.l.b16 %v1749
      %v1762 = vunpack.c.l.b16 %v1750
      %v1763 = vunpack.c.l.b16 %v1751
      %v1764 = vpack.c.b16 %v1761, %v1760
      %v1765 = vpack.c.b16 %v1763, %v1762
      %v1769 = vsel %vm648, %v1747, 0
      %1771 = vmatpush.bf16.msra.mxu0 0
      %1772 = vmatpush.bf16.msra.mxu0 0
      %1773 = vmatpush.bf16.msra.mxu0 0
      %1774 = vmatpush.bf16.msra.mxu0 0
      %1775 = vmatpush.bf16.msra.mxu0 0
      %1776 = vmatpush.bf16.msra.mxu0 0
      %1777 = vmatpush.bf16.msra.mxu0 %v1765
      %1778 = vmatpush.bf16.msra.mxu0 %v1764
      %1779 = vmatmul.bf16.gmra.mxu0 %v1769
      %v1780 = vpop.f32.mrf.mxu0
      %v1781 = vadd.f32 %v1754, %v1780
      %v1782 = vpop.f32.mrf.mxu0
      %v1783 = vadd.f32 %v1754, %v1782
      %1784 = vdwg.mxu0
      %v1785 = vmul.f32 %v1781, 0.5
      %v1786 = vmul.f32 %v1783, 0.5
      %v1787 = vmul.f32 %v1781, 0.044715
      %v1788 = vmul.f32 %v1783, 0.044715
      %v1789 = vmul.f32 %v1787, %v1781
      %v1790 = vmul.f32 %v1788, %v1783
      %v1791 = vmul.f32 %v1789, %v1781
      %v1792 = vmul.f32 %v1790, %v1783
      %v1793 = vadd.f32 %v1781, %v1791
      %v1794 = vadd.f32 %v1783, %v1792
      %v1795 = vmul.f32 %v1793, 0.7978846
      %v1796 = vmul.f32 %v1794, 0.7978846
      %v1797 = vtanh.pop %v1795
      %v1798 = vtanh.pop %v1796
      %v1799 = vadd.f32 %v1797, 1.0
      %v1800 = vadd.f32 %v1798, 1.0
      %v1801 = vmul.f32 %v1785, %v1799
      %v1802 = vmul.f32 %v1786, %v1800
      %v1803 = vpack.c.bf16 %v1802, %v1801
      %v1804 = vld [vmem:[%s624] sm:$0xf]
      %v1805 = vld [vmem:[%s624 + $0x4] sm:$0xf]
      %v1806 = vld [vmem:[%s624 + $0x8] sm:$0xf]
      %v1807 = vld [vmem:[%s624 + $0xc] sm:$0xf]
      %v1808 = vld [vmem:[%s624 + $0x10] sm:$0xf]
      %v1809 = vld [vmem:[%s624 + $0x14] sm:$0xf]
      %v1810 = vld [vmem:[%s624 + $0x18] sm:$0xf]
      %v1811 = vld [vmem:[%s624 + $0x1c] sm:$0xf]
      %v1812 = vld [vmem:[%s624 + $0x20] sm:$0xf]
      %v1813 = vld [vmem:[%s624 + $0x24] sm:$0xf]
      %v1814 = vld [vmem:[%s624 + $0x28] sm:$0xf]
      %v1815 = vld [vmem:[%s624 + $0x2c] sm:$0xf]
      %v1816 = vld [vmem:[%s624 + $0x30] sm:$0xf]
      %v1817 = vld [vmem:[%s624 + $0x34] sm:$0xf]
      %v1818 = vld [vmem:[%s624 + $0x38] sm:$0xf]
      %v1819 = vld [vmem:[%s624 + $0x3c] sm:$0xf]
      %v1820 = vld [vmem:[%s627] sm:$0x1]
      %v1822 = vperm.slane %v1820, 0
      %v1840 = vunpack.c.l.b16 %v1804
      %v1841 = vunpack.c.l.b16 %v1805
      %v1842 = vunpack.c.l.b16 %v1806
      %v1843 = vunpack.c.l.b16 %v1807
      %v1844 = vunpack.c.l.b16 %v1808
      %v1845 = vunpack.c.l.b16 %v1809
      %v1846 = vunpack.c.l.b16 %v1810
      %v1847 = vunpack.c.l.b16 %v1811
      %v1848 = vunpack.c.l.b16 %v1812
      %v1849 = vunpack.c.l.b16 %v1813
      %v1850 = vunpack.c.l.b16 %v1814
      %v1851 = vunpack.c.l.b16 %v1815
      %v1852 = vunpack.c.l.b16 %v1816
      %v1853 = vunpack.c.l.b16 %v1817
      %v1854 = vunpack.c.l.b16 %v1818
      %v1855 = vunpack.c.l.b16 %v1819
      %v1856 = vpack.c.b16 %v1841, %v1840
      %v1857 = vpack.c.b16 %v1843, %v1842
      %v1858 = vpack.c.b16 %v1845, %v1844
      %v1859 = vpack.c.b16 %v1847, %v1846
      %v1860 = vpack.c.b16 %v1849, %v1848
      %v1861 = vpack.c.b16 %v1851, %v1850
      %v1862 = vpack.c.b16 %v1853, %v1852
      %v1863 = vpack.c.b16 %v1855, %v1854
      %1872 = vmatpush.bf16.msra.mxu0 %v1863
      %1873 = vmatpush.bf16.msra.mxu0 %v1862
      %1874 = vmatpush.bf16.msra.mxu0 %v1861
      %1875 = vmatpush.bf16.msra.mxu0 %v1860
      %1876 = vmatpush.bf16.msra.mxu0 %v1859
      %1877 = vmatpush.bf16.msra.mxu0 %v1858
      %1878 = vmatpush.bf16.msra.mxu0 %v1857
      %1879 = vmatpush.bf16.msra.mxu0 %v1856
      %1880 = vmatmul.bf16.gmra.mxu0 %v1803
      %v1881 = vpop.f32.mrf.mxu0
      %v1882 = vadd.f32 %v1822, %v1881
      %v1883 = vpop.f32.mrf.mxu0
      %v1884 = vadd.f32 %v1822, %v1883
      %1885 = vdwg.mxu0
      %v1886 = vadd.f32 %v1689, %v1882
      %v1887 = vadd.f32 %v1690, %v1884
      %1888 = vst.msk [vmem:[#allocation2] sm:$0xff] %vm648, %v1886
      %1889 = vst.msk [vmem:[#allocation2 + $0x8] sm:$0xff] %vm648, %v1887
      %p1890 = scmp.eq.s32.totalorder %s29, 1
      // Predicated region
      $region77: #{_lambda_.2} parent=71 // pred_check
        %p1891 = pneg %p1890
      $region78: #{_lambda_.2} parent=71 // pred_check_branch
        %1893 = sbr.rel (%p1891) target = $region80
      $region79: #{_lambda_.2} parent=71 // pred_region
        %1894 = vst.msk [vmem:[%s632] sm:$0xff] %vm648, %v1886
        %1895 = vst.msk [vmem:[%s632 + $0x8] sm:$0xff] %vm648, %v1887
      $region80: #{_lambda_.2} parent=71 // pred_fallthru
        _
      %s1896 = smul.u32 2, %s28
      %p1897 = scmp.lt.s32.totalorder %s1896, 3
      %s1898 = scalar_select %p1897, %s1896, 3
      %s1899 = smul.addr %s1898, 8
      %s1900 = scalar_lea.vmem %s13, %s1899
      // Predicated region
      $region81: #{_lambda_.2} parent=71 // pred_check
        %p1901 = pneg %p387
      $region82: #{_lambda_.2} parent=71 // pred_check_branch
        %1903 = sbr.rel (%p1901) target = $region84
      $region83: #{_lambda_.2} parent=71 // pred_region
        %s1904 = smul.u32 2, %s28
      $region84: #{_lambda_.2} parent=71 // pred_fallthru
        _
    $region72: #{_lambda_.2} parent=5 // pred_fallthru
      _
    %p1905 = scmp.le.s32.totalorder 2, %s19
    // Predicated region
    $region85: #{_lambda_.2} parent=5 // pred_check
      %p1906 = pneg %p1905
    $region86: #{_lambda_.2} parent=5 // pred_check_branch
      %1908 = sbr.rel (%p1906) target = $region88
    $region87: #{_lambda_.2} parent=5 // pred_region
      %s1909 = ssub.s32 %s19, 2
      // Predicated region
      $region89: #{_lambda_.2} parent=87 // pred_check
        %p1910 = pneg %p393
      $region90: #{_lambda_.2} parent=87 // pred_check_branch
        %1912 = sbr.rel (%p1910) target = $region92
      $region91: #{_lambda_.2} parent=87 // pred_region
        %s1913 = smul.u32 2, %s30
        %p1914 = scmp.lt.s32.totalorder %s1913, 3
        %s1915 = scalar_select %p1914, %s1913, 3
        %s1916 = smul.addr %s1915, 8
        %s1917 = scalar_lea.vmem %s13, %s1916
      $region92: #{_lambda_.2} parent=87 // pred_fallthru
        _
    $region88: #{_lambda_.2} parent=5 // pred_fallthru
      _
  $region6: #{_lambda_.2} parent=0 // loop_footer
    %s23 = sadd.s32 1, %s19
  $region7: #{_lambda_.2} parent=0 // loop_footer_branch
    %18 = sbr.rel target = $region3
  $region8: #{_lambda_.2} parent=0 // loop_exit
    _

</llo_original>
